<compile_context>
chip_gen: v6e
topology: v6e:2x2x1
jax: 0.10.0
libtpu: 0.0.40
codegen_flags: <defaults>
</compile_context>

<pallas_src>
import functools

import jax
import jax.numpy as jnp
from jax.experimental import pallas as pl
from jax.experimental.pallas import tpu as pltpu


def _choose_tile(total, target, align):
    """Largest divisor of `total` that is a multiple of `align` and <= target.
    Falls back to the full extent when `total` is small or not alignable."""
    if total <= target or total % align != 0:
        return total
    best = align
    t = align
    while t <= target:
        if total % t == 0:
            best = t
        t += align
    return best


def _hw_params():
    """Generation-aware (vmem_limit_bytes, per-block byte target)."""
    try:
        cap = int(pltpu.get_tpu_info().vmem_capacity_bytes)
    except Exception:
        cap = 64 * 1024 * 1024
    if cap >= 100 * 1024 * 1024:            # v5e / v6e: 128 MiB physical VMEM
        return 96 * 1024 * 1024, 8 * 1024 * 1024
    return 48 * 1024 * 1024, 6 * 1024 * 1024  # v7x: 64 MiB physical VMEM


# ----------------------------------------------------------------------------
# Pass 1 (fused): spatial avg/max per (b, c) streamed over HW tiles + shared
#                 MLP + sigmoid in the finalize -> channel gate ca[b, :, 0].
# ----------------------------------------------------------------------------
def stats_gate_kernel(x_ref, w1_ref, b1_ref, w2_ref, b2_ref, ca_ref,
                      sum_acc, max_acc, *, inv_hw, hw_valid, thw, pad):
    # x_ref  : [1, C, thw]   input block (native dtype)
    # w1_ref : [Cr, C]  b1_ref: [Cr, 1]  w2_ref: [C, Cr]  b2_ref: [C, 1]
    # ca_ref : [1, C, 1]     f32 channel-attention gate for this batch
    # sum_acc / max_acc : [C, 128] f32 lane-parallel accumulators
    k = pl.program_id(1)

    @pl.when(k == 0)
    def _():
        sum_acc[...] = jnp.zeros(sum_acc.shape, sum_acc.dtype)
        max_acc[...] = jnp.full(max_acc.shape, -jnp.inf, max_acc.dtype)

    x = x_ref[0].astype(jnp.float32)                               # [C, thw]
    if pad:
        col = jax.lax.broadcasted_iota(jnp.int32, x.shape, 1) + k * thw
        valid = col < hw_valid
        x_sum = jnp.where(valid, x, 0.0)
        x_max = jnp.where(valid, x, -jnp.inf)
    else:
        x_sum = x
        x_max = x

    # Lane-parallel fold: only full-vreg VPU add/max in the hot loop
    # (no cross-lane XLU reduce per tile).
    s = x_sum[:, 0:128]
    m = x_max[:, 0:128]
    for i in range(1, thw // 128):
        s = s + x_sum[:, i * 128:(i + 1) * 128]
        m = jnp.maximum(m, x_max[:, i * 128:(i + 1) * 128])
    sum_acc[...] = sum_acc[...] + s
    max_acc[...] = jnp.maximum(max_acc[...], m)

    @pl.when(k == pl.num_programs(1) - 1)
    def _():
        avg_col = jnp.sum(sum_acc[...], axis=1, keepdims=True) * inv_hw  # [C, 1]
        max_col = jnp.max(max_acc[...], axis=1, keepdims=True)           # [C, 1]

        def mlp(v):                                                      # v: [C, 1]
            h = jnp.dot(w1_ref[...], v,
                        preferred_element_type=jnp.float32) + b1_ref[...]
            h = jnp.maximum(h, 0.0)                                      # ReLU
            return jnp.dot(w2_ref[...], h,
                           preferred_element_type=jnp.float32) + b2_ref[...]

        ca_ref[0] = jax.nn.sigmoid(mlp(avg_col) + mlp(max_col))          # [C, 1]


# ----------------------------------------------------------------------------
# Pass 2: channel mean/max of (ca * x), streamed over C tiles.  ca is applied
#         on the fly (the channel-attended tensor is never written to HBM);
#         mean & max land in one stacked pooled[B, 2, HW] output.
# ----------------------------------------------------------------------------
def pooled_maps_kernel(x_ref, ca_ref, pooled_ref, sum_acc, max_acc,
                       *, inv_c, acc_rows):
    # x_ref      : [1, tc, thw]  input block (native dtype)
    # ca_ref     : [1, tc, 1]    f32 channel gate block
    # pooled_ref : [1, 2, thw]   row 0 = channel mean, row 1 = channel max
    # sum_acc / max_acc : [acc_rows, thw] f32 accumulators
    k = pl.program_id(2)

    @pl.when(k == 0)
    def _():
        sum_acc[...] = jnp.zeros(sum_acc.shape, sum_acc.dtype)
        max_acc[...] = jnp.full(max_acc.shape, -jnp.inf, max_acc.dtype)

    xca = x_ref[0].astype(jnp.float32) * ca_ref[0]                 # [tc, thw]
    tc = xca.shape[0]
    if acc_rows == 8:
        # Sublane-group fold: full-vreg VPU ops; cross-sublane collapse only
        # in the finalize.
        s = xca[0:8, :]
        m = xca[0:8, :]
        for g in range(1, tc // 8):
            blk = xca[g * 8:(g + 1) * 8, :]
            s = s + blk
            m = jnp.maximum(m, blk)
    else:
        s = jnp.sum(xca, axis=0, keepdims=True)
        m = jnp.max(xca, axis=0, keepdims=True)
    sum_acc[...] = sum_acc[...] + s
    max_acc[...] = jnp.maximum(max_acc[...], m)

    @pl.when(k == pl.num_programs(2) - 1)
    def _():
        mean_row = jnp.sum(sum_acc[...], axis=0, keepdims=True) * inv_c  # [1, thw]
        max_row = jnp.max(max_acc[...], axis=0, keepdims=True)           # [1, thw]
        pooled_ref[0] = jnp.concatenate([mean_row, max_row], axis=0)     # [2, thw]


# ----------------------------------------------------------------------------
# Pass 3: fused apply: out = x * ca * sigmoid(bn(conv))   (lane-dense output)
# ----------------------------------------------------------------------------
def apply_kernel(x_ref, ca_ref, convbn_ref, o_ref):
    # x_ref      : [1, tc, thw]  input block (native dtype)
    # ca_ref     : [1, tc, 1]    f32 channel gate
    # convbn_ref : [1, 1, thw]   f32 BN-folded conv output (pre-sigmoid)
    # o_ref      : [1, tc, thw]
    gate = jax.nn.sigmoid(convbn_ref[0])                           # [1, thw]
    o_ref[0] = (x_ref[0] * (ca_ref[0] * gate)).astype(o_ref.dtype)


# ----------------------------------------------------------------------------
# Wrapper
# ----------------------------------------------------------------------------
@jax.jit
def cbam_forward(x, w1, b1c, w2, b2c, conv_w_4d, bn):
    # w1: [Cr, C] (torch [out, in]), b1c: [Cr, 1], w2: [C, Cr], b2c: [C, 1]
    B, C, H, W = x.shape
    HW = H * W
    HWp = ((HW + 127) // 128) * 128
    pad = HWp != HW

    vmem_limit, block_target = _hw_params()
    itemsize = jnp.dtype(x.dtype).itemsize

    x3 = x.reshape(B, C, HW)
    if pad:
        x3 = jnp.pad(x3, ((0, 0), (0, 0), (0, HWp - HW)))

    # dtype-aware sublane alignment for channel tiles (f32:8, bf16:16, int8:32)
    tc_align = max(8, (8 * 4) // itemsize)
    tc = _choose_tile(C, 256, tc_align)

    # pass-1 HW tile: full-C block; bound so the in-kernel lane-fold unroll
    # stays short (<= 64 chunks of 128 lanes).
    thw1_target = max(128, min(block_target // max(1, C * itemsize), 8192)
                      // 128 * 128)
    thw1 = _choose_tile(HWp, thw1_target, 128)

    # pass-2/3 HW tile: tc-row blocks sized toward the generation-aware target.
    thw2_target = max(128, (block_target // max(1, tc * itemsize)) // 128 * 128)
    thw2 = _choose_tile(HWp, thw2_target, 128)

    # ---- pass 1: fused spatial stats + MLP + sigmoid -> ca[B, C, 1] ---------
    # (v7x note: B is the only parallel axis here; with B >= 2 both TCs are fed.)
    ca = pl.pallas_call(
        functools.partial(stats_gate_kernel, inv_hw=1.0 / HW, hw_valid=HW,
                          thw=thw1, pad=pad),
        grid=(B, HWp // thw1),
        in_specs=[
            pl.BlockSpec((1, C, thw1), lambda b, k: (b, 0, k)),
            pl.BlockSpec(memory_space=pltpu.MemorySpace.VMEM),
            pl.BlockSpec(memory_space=pltpu.MemorySpace.VMEM),
            pl.BlockSpec(memory_space=pltpu.MemorySpace.VMEM),
            pl.BlockSpec(memory_space=pltpu.MemorySpace.VMEM),
        ],
        out_specs=pl.BlockSpec((1, C, 1), lambda b, k: (b, 0, 0)),
        out_shape=jax.ShapeDtypeStruct((B, C, 1), jnp.float32),
        scratch_shapes=[pltpu.VMEM((C, 128), jnp.float32),
                        pltpu.VMEM((C, 128), jnp.float32)],
        compiler_params=pltpu.CompilerParams(
            dimension_semantics=("parallel", "arbitrary"),
            vmem_limit_bytes=vmem_limit),
    )(x3, w1, b1c, w2, b2c)

    # ---- pass 2: channel mean / max of (ca * x) -> pooled[B, 2, HWp] --------
    acc_rows = 8 if (tc % 8 == 0 and tc >= 8) else 1
    pooled = pl.pallas_call(
        functools.partial(pooled_maps_kernel, inv_c=1.0 / C, acc_rows=acc_rows),
        grid=(B, HWp // thw2, C // tc),
        in_specs=[
            pl.BlockSpec((1, tc, thw2), lambda b, j, k: (b, k, j)),
            pl.BlockSpec((1, tc, 1), lambda b, j, k: (b, k, 0)),
        ],
        out_specs=pl.BlockSpec((1, 2, thw2), lambda b, j, k: (b, 0, j)),
        out_shape=jax.ShapeDtypeStruct((B, 2, HWp), jnp.float32),
        scratch_shapes=[pltpu.VMEM((acc_rows, thw2), jnp.float32),
                        pltpu.VMEM((acc_rows, thw2), jnp.float32)],
        compiler_params=pltpu.CompilerParams(
            dimension_semantics=("parallel", "parallel", "arbitrary"),
            vmem_limit_bytes=vmem_limit),
    )(x3, ca)

    # ---- tiny 7x7 conv (2->1, pad 3) + folded BN on KB-scale pooled maps ----
    # TODO(synk): optionally move this conv into Pallas (98 shifted adds or an
    # im2col matmul) to remove the remaining XLA glue on the serial path.
    y = pooled[:, :, :HW].reshape(B, 2, H, W)
    conv = jax.lax.conv_general_dilated(
        y, conv_w_4d.astype(jnp.float32), window_strides=(1, 1),
        padding=((3, 3), (3, 3)),
        dimension_numbers=("NCHW", "OIHW", "NCHW"))                 # [B, 1, H, W]
    conv_bn = (conv * bn[0] + bn[1]).reshape(B, 1, HW)
    if pad:
        conv_bn = jnp.pad(conv_bn, ((0, 0), (0, 0), (0, HWp - HW)))

    # ---- pass 3: fused elementwise apply: out = x * ca * sigmoid(bn(conv)) --
    out3 = pl.pallas_call(
        apply_kernel,
        grid=(B, C // tc, HWp // thw2),
        in_specs=[
            pl.BlockSpec((1, tc, thw2), lambda b, i, j: (b, i, j)),
            pl.BlockSpec((1, tc, 1), lambda b, i, j: (b, i, 0)),
            pl.BlockSpec((1, 1, thw2), lambda b, i, j: (b, 0, j)),
        ],
        out_specs=pl.BlockSpec((1, tc, thw2), lambda b, i, j: (b, i, j)),
        out_shape=jax.ShapeDtypeStruct((B, C, HWp), x.dtype),
        compiler_params=pltpu.CompilerParams(
            dimension_semantics=("parallel", "parallel", "parallel"),
            vmem_limit_bytes=vmem_limit),
    )(x3, ca, conv_bn)

    return out3[:, :, :HW].reshape(B, C, H, W)


# ----------------------------------------------------------------------------
# Pure-JAX reference (numerical sanity check)
# ----------------------------------------------------------------------------
def cbam_reference(x, w1, b1, w2, b2, conv_w_4d, bn):
    avg = x.mean(axis=(2, 3))
    mx = x.max(axis=(2, 3))

    def mlp(v):
        h = jnp.maximum(v @ w1.T + b1, 0.0)
        return h @ w2.T + b2

    att = jax.nn.sigmoid(mlp(avg) + mlp(mx))
    x_ca = x * att[:, :, None, None]

    y = jnp.stack([x_ca.mean(axis=1), x_ca.max(axis=1)], axis=1)    # [B, 2, H, W]
    conv = jax.lax.conv_general_dilated(
        y, conv_w_4d, window_strides=(1, 1), padding=((3, 3), (3, 3)),
        dimension_numbers=("NCHW", "OIHW", "NCHW"))
    gate = jax.nn.sigmoid(conv * bn[0] + bn[1])                     # [B, 1, H, W]
    return x_ca * gate


if __name__ == "__main__":
    # small but reduction-ratio-consistent shapes
    B, C, H, W = 2, 32, 16, 16
    reduction_ratio = 16
    Cr = C // reduction_ratio

    key = jax.random.PRNGKey(0)
    kx, k1, k2, k3, k4, k5, k6 = jax.random.split(key, 7)

    x = jax.random.normal(kx, (B, C, H, W), dtype=jnp.float32)

    # Linear(channels -> channels//r) and Linear(channels//r -> channels)
    w1 = jax.random.normal(k1, (Cr, C), dtype=jnp.float32) * 0.2    # torch [out, in]
    b1 = jax.random.normal(k2, (Cr,), dtype=jnp.float32) * 0.1
    w2 = jax.random.normal(k3, (C, Cr), dtype=jnp.float32) * 0.2
    b2 = jax.random.normal(k4, (C,), dtype=jnp.float32) * 0.1

    # Conv2d(2, 1, kernel_size=7, padding=3, bias=False)
    conv_w_4d = jax.random.normal(k5, (1, 2, 7, 7), dtype=jnp.float32) * 0.1

    # BatchNorm2d(1) in inference form: folded into (scale, bias)
    bn_key = jax.random.split(k6, 4)
    gamma = 1.0 + 0.1 * jax.random.normal(bn_key[0], (), dtype=jnp.float32)
    beta = 0.1 * jax.random.normal(bn_key[1], (), dtype=jnp.float32)
    running_mean = 0.1 * jax.random.normal(bn_key[2], (), dtype=jnp.float32)
    running_var = jax.random.uniform(bn_key[3], (), jnp.float32, 0.5, 1.5)
    eps = 1e-5
    bn_scale = gamma / jnp.sqrt(running_var + eps)
    bn_bias = beta - running_mean * bn_scale
    bn = jnp.stack([bn_scale, bn_bias])                             # [2]

    # kernel-friendly parameter layouts (column biases for the column MLP)
    b1c = b1.reshape(Cr, 1)
    b2c = b2.reshape(C, 1)

    out = cbam_forward(x, w1, b1c, w2, b2c, conv_w_4d, bn)
    out = jax.block_until_ready(out)

    ref = cbam_reference(x, w1, b1, w2, b2, conv_w_4d, bn)
    assert out.shape == (B, C, H, W)
    err = float(jnp.max(jnp.abs(out - ref)))
    assert jnp.allclose(out, ref, atol=1e-3, rtol=1e-3), err

    print("KERNEL_OK")
</pallas_src>

<mosaic_0001>
module attributes {stable_mosaic.version = 11 : i64} {
  func.func @pooled_maps_kernel(%arg0: i32, %arg1: i32, %arg2: i32, %arg3: memref<1x32x256xf32, #tpu.memory_space<vmem>>, %arg4: memref<1x32x1xf32, #tpu.memory_space<vmem>>, %arg5: memref<1x2x256xf32, #tpu.memory_space<vmem>>, %arg6: memref<8x256xf32, #tpu.memory_space<vmem>>, %arg7: memref<8x256xf32, #tpu.memory_space<vmem>>) attributes {dimension_semantics = [#tpu.dimension_semantics<parallel>, #tpu.dimension_semantics<parallel>, #tpu.dimension_semantics<arbitrary>], iteration_bounds = array<i64: 2, 1, 1>, scalar_prefetch = 0 : i64, scratch_operands = 2 : i64, tpu.core_type = #tpu.core_type<tc>, window_params = [{transform_indices = @transform_0, window_bounds = array<i64: 1, 32, 256>}, {transform_indices = @transform_1, window_bounds = array<i64: 1, 32, 1>}, {transform_indices = @transform_2, window_bounds = array<i64: 1, 2, 256>}]} {
    %c0_i32 = arith.constant 0 : i32
    %0 = arith.cmpi eq, %arg2, %c0_i32 : i32
    %1 = arith.extui %0 : i1 to i32
    %c0_i32_0 = arith.constant 0 : i32
    %2 = arith.cmpi ne, %1, %c0_i32_0 : i32
    scf.if %2 {
      %cst = arith.constant 0.000000e+00 : f32
      %29 = vector.broadcast %cst : f32 to vector<8x256xf32>
      %c0_16 = arith.constant 0 : index
      %c0_17 = arith.constant 0 : index
      %30 = vector.load %arg6[%c0_16, %c0_17] : memref<8x256xf32, #tpu.memory_space<vmem>>, vector<8x256xf32>
      tpu.vector_store %arg6[%c0_16, %c0_17], %29 {strides = array<i32>} : memref<8x256xf32, #tpu.memory_space<vmem>>, vector<8x256xf32>,
      %cst_18 = arith.constant 0xFF800000 : f32
      %31 = vector.broadcast %cst_18 : f32 to vector<8x256xf32>
      %c0_19 = arith.constant 0 : index
      %c0_20 = arith.constant 0 : index
      %32 = vector.load %arg7[%c0_19, %c0_20] : memref<8x256xf32, #tpu.memory_space<vmem>>, vector<8x256xf32>
      tpu.vector_store %arg7[%c0_19, %c0_20], %31 {strides = array<i32>} : memref<8x256xf32, #tpu.memory_space<vmem>>, vector<8x256xf32>,
    } else {
    }
    %c0 = arith.constant 0 : index
    %c0_1 = arith.constant 0 : index
    %c0_2 = arith.constant 0 : index
    %3 = vector.load %arg3[%c0, %c0_1, %c0_2] : memref<1x32x256xf32, #tpu.memory_space<vmem>>, vector<1x32x256xf32>
    %4 = vector.shape_cast %3 : vector<1x32x256xf32> to vector<32x256xf32>
    %c0_3 = arith.constant 0 : index
    %c0_4 = arith.constant 0 : index
    %c0_5 = arith.constant 0 : index
    %5 = vector.load %arg4[%c0_3, %c0_4, %c0_5] : memref<1x32x1xf32, #tpu.memory_space<vmem>>, vector<1x32x1xf32>
    %6 = vector.shape_cast %5 : vector<1x32x1xf32> to vector<32x1xf32>
    %7 = vector.broadcast %6 : vector<32x1xf32> to vector<32x256xf32>
    %8 = arith.mulf %4, %7 : vector<32x256xf32>
    %9 = vector.extract_strided_slice %8 {offsets = [0, 0], sizes = [8, 256], strides = [1, 1]} : vector<32x256xf32> to vector<8x256xf32>
    %10 = vector.extract_strided_slice %8 {offsets = [0, 0], sizes = [8, 256], strides = [1, 1]} : vector<32x256xf32> to vector<8x256xf32>
    %11 = vector.extract_strided_slice %8 {offsets = [8, 0], sizes = [8, 256], strides = [1, 1]} : vector<32x256xf32> to vector<8x256xf32>
    %12 = arith.addf %9, %11 : vector<8x256xf32>
    %13 = arith.maximumf %10, %11 : vector<8x256xf32>
    %14 = vector.extract_strided_slice %8 {offsets = [16, 0], sizes = [8, 256], strides = [1, 1]} : vector<32x256xf32> to vector<8x256xf32>
    %15 = arith.addf %12, %14 : vector<8x256xf32>
    %16 = arith.maximumf %13, %14 : vector<8x256xf32>
    %17 = vector.extract_strided_slice %8 {offsets = [24, 0], sizes = [8, 256], strides = [1, 1]} : vector<32x256xf32> to vector<8x256xf32>
    %18 = arith.addf %15, %17 : vector<8x256xf32>
    %19 = arith.maximumf %16, %17 : vector<8x256xf32>
    %c0_6 = arith.constant 0 : index
    %c0_7 = arith.constant 0 : index
    %20 = vector.load %arg6[%c0_6, %c0_7] : memref<8x256xf32, #tpu.memory_space<vmem>>, vector<8x256xf32>
    %21 = arith.addf %20, %18 : vector<8x256xf32>
    %c0_8 = arith.constant 0 : index
    %c0_9 = arith.constant 0 : index
    %22 = vector.load %arg6[%c0_8, %c0_9] : memref<8x256xf32, #tpu.memory_space<vmem>>, vector<8x256xf32>
    tpu.vector_store %arg6[%c0_8, %c0_9], %21 {strides = array<i32>} : memref<8x256xf32, #tpu.memory_space<vmem>>, vector<8x256xf32>,
    %c0_10 = arith.constant 0 : index
    %c0_11 = arith.constant 0 : index
    %23 = vector.load %arg7[%c0_10, %c0_11] : memref<8x256xf32, #tpu.memory_space<vmem>>, vector<8x256xf32>
    %24 = arith.maximumf %23, %19 : vector<8x256xf32>
    %c0_12 = arith.constant 0 : index
    %c0_13 = arith.constant 0 : index
    %25 = vector.load %arg7[%c0_12, %c0_13] : memref<8x256xf32, #tpu.memory_space<vmem>>, vector<8x256xf32>
    tpu.vector_store %arg7[%c0_12, %c0_13], %24 {strides = array<i32>} : memref<8x256xf32, #tpu.memory_space<vmem>>, vector<8x256xf32>,
    %c0_i32_14 = arith.constant 0 : i32
    %26 = arith.cmpi eq, %arg2, %c0_i32_14 : i32
    %27 = arith.extui %26 : i1 to i32
    %c0_i32_15 = arith.constant 0 : i32
    %28 = arith.cmpi ne, %27, %c0_i32_15 : i32
    scf.if %28 {
      %c0_16 = arith.constant 0 : index
      %c0_17 = arith.constant 0 : index
      %29 = vector.load %arg6[%c0_16, %c0_17] : memref<8x256xf32, #tpu.memory_space<vmem>>, vector<8x256xf32>
      %cst = arith.constant dense<0.000000e+00> : vector<256xf32>
      %30 = vector.multi_reduction <add>, %29, %cst [0] : vector<8x256xf32> to vector<256xf32>
      %31 = vector.shape_cast %30 : vector<256xf32> to vector<1x256xf32>
      %cst_18 = arith.constant 3.125000e-02 : f32
      %32 = vector.broadcast %cst_18 : f32 to vector<1x256xf32>
      %33 = arith.mulf %31, %32 : vector<1x256xf32>
      %c0_19 = arith.constant 0 : index
      %c0_20 = arith.constant 0 : index
      %34 = vector.load %arg7[%c0_19, %c0_20] : memref<8x256xf32, #tpu.memory_space<vmem>>, vector<8x256xf32>
      %cst_21 = arith.constant dense<0xFF800000> : vector<256xf32>
      %35 = vector.multi_reduction <maximumf>, %34, %cst_21 [0] : vector<8x256xf32> to vector<256xf32>
      %36 = vector.shape_cast %35 : vector<256xf32> to vector<1x256xf32>
      %37 = tpu.concatenate %33, %36 in 0 : vector<1x256xf32>, vector<1x256xf32> -> vector<2x256xf32>
      %c0_22 = arith.constant 0 : index
      %c0_23 = arith.constant 0 : index
      %c0_24 = arith.constant 0 : index
      %38 = vector.load %arg5[%c0_22, %c0_23, %c0_24] : memref<1x2x256xf32, #tpu.memory_space<vmem>>, vector<1x2x256xf32>
      %39 = vector.shape_cast %38 : vector<1x2x256xf32> to vector<2x256xf32>
      %40 = vector.shape_cast %37 : vector<2x256xf32> to vector<1x2x256xf32>
      tpu.vector_store %arg5[%c0_22, %c0_23, %c0_24], %40 {strides = array<i32>} : memref<1x2x256xf32, #tpu.memory_space<vmem>>, vector<1x2x256xf32>,
    } else {
    }
    return
  }
  func.func @transform_0(%arg0: i32, %arg1: i32, %arg2: i32) -> (i32, i32, i32) {
    %c0_i32 = arith.constant 0 : i32
    return %arg0, %arg2, %arg1 : i32, i32, i32
  }
  func.func @transform_1(%arg0: i32, %arg1: i32, %arg2: i32) -> (i32, i32, i32) {
    %c0_i32 = arith.constant 0 : i32
    %c0_i32_0 = arith.constant 0 : i32
    return %arg0, %arg2, %c0_i32 : i32, i32, i32
  }
  func.func @transform_2(%arg0: i32, %arg1: i32, %arg2: i32) -> (i32, i32, i32) {
    %c0_i32 = arith.constant 0 : i32
    %c0_i32_0 = arith.constant 0 : i32
    return %arg0, %c0_i32, %arg1 : i32, i32, i32
  }
}

module attributes {stable_mosaic.version = 11 : i64} {
  func.func @stats_gate_kernel(%arg0: i32, %arg1: i32, %arg2: memref<1x32x256xf32, #tpu.memory_space<vmem>>, %arg3: memref<2x32xf32, #tpu.memory_space<vmem>>, %arg4: memref<2x1xf32, #tpu.memory_space<vmem>>, %arg5: memref<32x2xf32, #tpu.memory_space<vmem>>, %arg6: memref<32x1xf32, #tpu.memory_space<vmem>>, %arg7: memref<1x32x1xf32, #tpu.memory_space<vmem>>, %arg8: memref<32x128xf32, #tpu.memory_space<vmem>>, %arg9: memref<32x128xf32, #tpu.memory_space<vmem>>) attributes {dimension_semantics = [#tpu.dimension_semantics<parallel>, #tpu.dimension_semantics<arbitrary>], iteration_bounds = array<i64: 2, 1>, scalar_prefetch = 0 : i64, scratch_operands = 2 : i64, tpu.core_type = #tpu.core_type<tc>, window_params = [{transform_indices = @transform_0, window_bounds = array<i64: 1, 32, 256>}, {pipeline_mode = #tpu.pipeline_mode<synchronous>, transform_indices = @transform_1, window_bounds = array<i64: 2, 32>}, {pipeline_mode = #tpu.pipeline_mode<synchronous>, transform_indices = @transform_2, window_bounds = array<i64: 2, 1>}, {pipeline_mode = #tpu.pipeline_mode<synchronous>, transform_indices = @transform_3, window_bounds = array<i64: 32, 2>}, {pipeline_mode = #tpu.pipeline_mode<synchronous>, transform_indices = @transform_4, window_bounds = array<i64: 32, 1>}, {transform_indices = @transform_5, window_bounds = array<i64: 1, 32, 1>}]} {
    %c0_i32 = arith.constant 0 : i32
    %0 = arith.cmpi eq, %arg1, %c0_i32 : i32
    %1 = arith.extui %0 : i1 to i32
    %c0_i32_0 = arith.constant 0 : i32
    %2 = arith.cmpi ne, %1, %c0_i32_0 : i32
    scf.if %2 {
      %cst = arith.constant 0.000000e+00 : f32
      %20 = vector.broadcast %cst : f32 to vector<32x128xf32>
      %c0_13 = arith.constant 0 : index
      %c0_14 = arith.constant 0 : index
      %21 = vector.load %arg8[%c0_13, %c0_14] : memref<32x128xf32, #tpu.memory_space<vmem>>, vector<32x128xf32>
      tpu.vector_store %arg8[%c0_13, %c0_14], %20 {strides = array<i32>} : memref<32x128xf32, #tpu.memory_space<vmem>>, vector<32x128xf32>,
      %cst_15 = arith.constant 0xFF800000 : f32
      %22 = vector.broadcast %cst_15 : f32 to vector<32x128xf32>
      %c0_16 = arith.constant 0 : index
      %c0_17 = arith.constant 0 : index
      %23 = vector.load %arg9[%c0_16, %c0_17] : memref<32x128xf32, #tpu.memory_space<vmem>>, vector<32x128xf32>
      tpu.vector_store %arg9[%c0_16, %c0_17], %22 {strides = array<i32>} : memref<32x128xf32, #tpu.memory_space<vmem>>, vector<32x128xf32>,
    } else {
    }
    %c0 = arith.constant 0 : index
    %c0_1 = arith.constant 0 : index
    %c0_2 = arith.constant 0 : index
    %3 = vector.load %arg2[%c0, %c0_1, %c0_2] : memref<1x32x256xf32, #tpu.memory_space<vmem>>, vector<1x32x256xf32>
    %4 = vector.shape_cast %3 : vector<1x32x256xf32> to vector<32x256xf32>
    %5 = vector.extract_strided_slice %4 {offsets = [0, 0], sizes = [32, 128], strides = [1, 1]} : vector<32x256xf32> to vector<32x128xf32>
    %6 = vector.extract_strided_slice %4 {offsets = [0, 0], sizes = [32, 128], strides = [1, 1]} : vector<32x256xf32> to vector<32x128xf32>
    %7 = vector.extract_strided_slice %4 {offsets = [0, 128], sizes = [32, 128], strides = [1, 1]} : vector<32x256xf32> to vector<32x128xf32>
    %8 = arith.addf %5, %7 : vector<32x128xf32>
    %9 = vector.extract_strided_slice %4 {offsets = [0, 128], sizes = [32, 128], strides = [1, 1]} : vector<32x256xf32> to vector<32x128xf32>
    %10 = arith.maximumf %6, %9 : vector<32x128xf32>
    %c0_3 = arith.constant 0 : index
    %c0_4 = arith.constant 0 : index
    %11 = vector.load %arg8[%c0_3, %c0_4] : memref<32x128xf32, #tpu.memory_space<vmem>>, vector<32x128xf32>
    %12 = arith.addf %11, %8 : vector<32x128xf32>
    %c0_5 = arith.constant 0 : index
    %c0_6 = arith.constant 0 : index
    %13 = vector.load %arg8[%c0_5, %c0_6] : memref<32x128xf32, #tpu.memory_space<vmem>>, vector<32x128xf32>
    tpu.vector_store %arg8[%c0_5, %c0_6], %12 {strides = array<i32>} : memref<32x128xf32, #tpu.memory_space<vmem>>, vector<32x128xf32>,
    %c0_7 = arith.constant 0 : index
    %c0_8 = arith.constant 0 : index
    %14 = vector.load %arg9[%c0_7, %c0_8] : memref<32x128xf32, #tpu.memory_space<vmem>>, vector<32x128xf32>
    %15 = arith.maximumf %14, %10 : vector<32x128xf32>
    %c0_9 = arith.constant 0 : index
    %c0_10 = arith.constant 0 : index
    %16 = vector.load %arg9[%c0_9, %c0_10] : memref<32x128xf32, #tpu.memory_space<vmem>>, vector<32x128xf32>
    tpu.vector_store %arg9[%c0_9, %c0_10], %15 {strides = array<i32>} : memref<32x128xf32, #tpu.memory_space<vmem>>, vector<32x128xf32>,
    %c0_i32_11 = arith.constant 0 : i32
    %17 = arith.cmpi eq, %arg1, %c0_i32_11 : i32
    %18 = arith.extui %17 : i1 to i32
    %c0_i32_12 = arith.constant 0 : i32
    %19 = arith.cmpi ne, %18, %c0_i32_12 : i32
    scf.if %19 {
      %c0_13 = arith.constant 0 : index
      %c0_14 = arith.constant 0 : index
      %20 = vector.load %arg8[%c0_13, %c0_14] : memref<32x128xf32, #tpu.memory_space<vmem>>, vector<32x128xf32>
      %cst = arith.constant dense<0.000000e+00> : vector<32xf32>
      %21 = vector.multi_reduction <add>, %20, %cst [1] : vector<32x128xf32> to vector<32xf32>
      %22 = vector.shape_cast %21 : vector<32xf32> to vector<32x1xf32>
      %cst_15 = arith.constant 3.906250e-03 : f32
      %23 = vector.broadcast %cst_15 : f32 to vector<32x1xf32>
      %24 = arith.mulf %22, %23 : vector<32x1xf32>
      %c0_16 = arith.constant 0 : index
      %c0_17 = arith.constant 0 : index
      %25 = vector.load %arg9[%c0_16, %c0_17] : memref<32x128xf32, #tpu.memory_space<vmem>>, vector<32x128xf32>
      %cst_18 = arith.constant dense<0xFF800000> : vector<32xf32>
      %26 = vector.multi_reduction <maximumf>, %25, %cst_18 [1] : vector<32x128xf32> to vector<32xf32>
      %27 = vector.shape_cast %26 : vector<32xf32> to vector<32x1xf32>
      %c0_19 = arith.constant 0 : index
      %c0_20 = arith.constant 0 : index
      %28 = vector.load %arg3[%c0_19, %c0_20] : memref<2x32xf32, #tpu.memory_space<vmem>>, vector<2x32xf32>
      %cst_21 = arith.constant dense<0.000000e+00> : vector<2x1xf32>
      %29 = tpu.matmul %28, %24, %cst_21 {dimension_numbers = #tpu.dot_dimension_numbers<[1], [0], [0], [1], [0, 0, 1, 1], [], []>} : vector<2x32xf32>, vector<32x1xf32>, vector<2x1xf32> -> vector<2x1xf32>
      %c0_22 = arith.constant 0 : index
      %c0_23 = arith.constant 0 : index
      %30 = vector.load %arg4[%c0_22, %c0_23] : memref<2x1xf32, #tpu.memory_space<vmem>>, vector<2x1xf32>
      %31 = arith.addf %29, %30 : vector<2x1xf32>
      %cst_24 = arith.constant 0.000000e+00 : f32
      %32 = vector.broadcast %cst_24 : f32 to vector<2x1xf32>
      %33 = arith.maximumf %31, %32 : vector<2x1xf32>
      %c0_25 = arith.constant 0 : index
      %c0_26 = arith.constant 0 : index
      %34 = vector.load %arg5[%c0_25, %c0_26] : memref<32x2xf32, #tpu.memory_space<vmem>>, vector<32x2xf32>
      %cst_27 = arith.constant dense<0.000000e+00> : vector<32x1xf32>
      %35 = tpu.matmul %34, %33, %cst_27 {dimension_numbers = #tpu.dot_dimension_numbers<[1], [0], [0], [1], [0, 0, 1, 1], [], []>} : vector<32x2xf32>, vector<2x1xf32>, vector<32x1xf32> -> vector<32x1xf32>
      %c0_28 = arith.constant 0 : index
      %c0_29 = arith.constant 0 : index
      %36 = vector.load %arg6[%c0_28, %c0_29] : memref<32x1xf32, #tpu.memory_space<vmem>>, vector<32x1xf32>
      %37 = arith.addf %35, %36 : vector<32x1xf32>
      %c0_30 = arith.constant 0 : index
      %c0_31 = arith.constant 0 : index
      %38 = vector.load %arg3[%c0_30, %c0_31] : memref<2x32xf32, #tpu.memory_space<vmem>>, vector<2x32xf32>
      %cst_32 = arith.constant dense<0.000000e+00> : vector<2x1xf32>
      %39 = tpu.matmul %38, %27, %cst_32 {dimension_numbers = #tpu.dot_dimension_numbers<[1], [0], [0], [1], [0, 0, 1, 1], [], []>} : vector<2x32xf32>, vector<32x1xf32>, vector<2x1xf32> -> vector<2x1xf32>
      %c0_33 = arith.constant 0 : index
      %c0_34 = arith.constant 0 : index
      %40 = vector.load %arg4[%c0_33, %c0_34] : memref<2x1xf32, #tpu.memory_space<vmem>>, vector<2x1xf32>
      %41 = arith.addf %39, %40 : vector<2x1xf32>
      %cst_35 = arith.constant 0.000000e+00 : f32
      %42 = vector.broadcast %cst_35 : f32 to vector<2x1xf32>
      %43 = arith.maximumf %41, %42 : vector<2x1xf32>
      %c0_36 = arith.constant 0 : index
      %c0_37 = arith.constant 0 : index
      %44 = vector.load %arg5[%c0_36, %c0_37] : memref<32x2xf32, #tpu.memory_space<vmem>>, vector<32x2xf32>
      %cst_38 = arith.constant dense<0.000000e+00> : vector<32x1xf32>
      %45 = tpu.matmul %44, %43, %cst_38 {dimension_numbers = #tpu.dot_dimension_numbers<[1], [0], [0], [1], [0, 0, 1, 1], [], []>} : vector<32x2xf32>, vector<2x1xf32>, vector<32x1xf32> -> vector<32x1xf32>
      %c0_39 = arith.constant 0 : index
      %c0_40 = arith.constant 0 : index
      %46 = vector.load %arg6[%c0_39, %c0_40] : memref<32x1xf32, #tpu.memory_space<vmem>>, vector<32x1xf32>
      %47 = arith.addf %45, %46 : vector<32x1xf32>
      %48 = arith.addf %37, %47 : vector<32x1xf32>
      %49 = arith.negf %48 : vector<32x1xf32>
      %50 = math.exp %49 : vector<32x1xf32>
      %cst_41 = arith.constant 1.000000e+00 : f32
      %51 = vector.broadcast %cst_41 : f32 to vector<32x1xf32>
      %52 = arith.addf %51, %50 : vector<32x1xf32>
      %53 = arith.divf %51, %52 : vector<32x1xf32>
      %c0_42 = arith.constant 0 : index
      %c0_43 = arith.constant 0 : index
      %c0_44 = arith.constant 0 : index
      %54 = vector.load %arg7[%c0_42, %c0_43, %c0_44] : memref<1x32x1xf32, #tpu.memory_space<vmem>>, vector<1x32x1xf32>
      %55 = vector.shape_cast %54 : vector<1x32x1xf32> to vector<32x1xf32>
      %56 = vector.shape_cast %53 : vector<32x1xf32> to vector<1x32x1xf32>
      tpu.vector_store %arg7[%c0_42, %c0_43, %c0_44], %56 {strides = array<i32>} : memref<1x32x1xf32, #tpu.memory_space<vmem>>, vector<1x32x1xf32>,
    } else {
    }
    return
  }
  func.func @transform_0(%arg0: i32, %arg1: i32) -> (i32, i32, i32) {
    %c0_i32 = arith.constant 0 : i32
    %c0_i32_0 = arith.constant 0 : i32
    return %arg0, %c0_i32, %arg1 : i32, i32, i32
  }
  func.func @transform_1(%arg0: i32, %arg1: i32) -> (i32, i32) {
    %c0_i32 = arith.constant 0 : i32
    %c0_i32_0 = arith.constant 0 : i32
    %c0_i32_1 = arith.constant 0 : i32
    return %c0_i32, %c0_i32_0 : i32, i32
  }
  func.func @transform_2(%arg0: i32, %arg1: i32) -> (i32, i32) {
    %c0_i32 = arith.constant 0 : i32
    %c0_i32_0 = arith.constant 0 : i32
    %c0_i32_1 = arith.constant 0 : i32
    return %c0_i32, %c0_i32_0 : i32, i32
  }
  func.func @transform_3(%arg0: i32, %arg1: i32) -> (i32, i32) {
    %c0_i32 = arith.constant 0 : i32
    %c0_i32_0 = arith.constant 0 : i32
    %c0_i32_1 = arith.constant 0 : i32
    return %c0_i32, %c0_i32_0 : i32, i32
  }
  func.func @transform_4(%arg0: i32, %arg1: i32) -> (i32, i32) {
    %c0_i32 = arith.constant 0 : i32
    %c0_i32_0 = arith.constant 0 : i32
    %c0_i32_1 = arith.constant 0 : i32
    return %c0_i32, %c0_i32_0 : i32, i32
  }
  func.func @transform_5(%arg0: i32, %arg1: i32) -> (i32, i32, i32) {
    %c0_i32 = arith.constant 0 : i32
    %c0_i32_0 = arith.constant 0 : i32
    %c0_i32_1 = arith.constant 0 : i32
    return %arg0, %c0_i32, %c0_i32_0 : i32, i32, i32
  }
}

module attributes {stable_mosaic.version = 11 : i64} {
  func.func @apply_kernel(%arg0: i32, %arg1: i32, %arg2: i32, %arg3: memref<1x32x256xf32, #tpu.memory_space<vmem>>, %arg4: memref<1x32x1xf32, #tpu.memory_space<vmem>>, %arg5: memref<1x1x256xf32, #tpu.memory_space<vmem>>, %arg6: memref<1x32x256xf32, #tpu.memory_space<vmem>>) attributes {dimension_semantics = [#tpu.dimension_semantics<parallel>, #tpu.dimension_semantics<parallel>, #tpu.dimension_semantics<parallel>], iteration_bounds = array<i64: 2, 1, 1>, scalar_prefetch = 0 : i64, scratch_operands = 0 : i64, tpu.core_type = #tpu.core_type<tc>, window_params = [{transform_indices = @transform_0, window_bounds = array<i64: 1, 32, 256>}, {transform_indices = @transform_1, window_bounds = array<i64: 1, 32, 1>}, {transform_indices = @transform_2, window_bounds = array<i64: 1, 1, 256>}, {transform_indices = @transform_3, window_bounds = array<i64: 1, 32, 256>}]} {
    %c0 = arith.constant 0 : index
    %c0_0 = arith.constant 0 : index
    %c0_1 = arith.constant 0 : index
    %0 = vector.load %arg5[%c0, %c0_0, %c0_1] : memref<1x1x256xf32, #tpu.memory_space<vmem>>, vector<1x1x256xf32>
    %1 = vector.shape_cast %0 : vector<1x1x256xf32> to vector<1x256xf32>
    %2 = arith.negf %1 : vector<1x256xf32>
    %3 = math.exp %2 : vector<1x256xf32>
    %cst = arith.constant 1.000000e+00 : f32
    %4 = vector.broadcast %cst : f32 to vector<1x256xf32>
    %5 = arith.addf %4, %3 : vector<1x256xf32>
    %6 = arith.divf %4, %5 : vector<1x256xf32>
    %c0_2 = arith.constant 0 : index
    %c0_3 = arith.constant 0 : index
    %c0_4 = arith.constant 0 : index
    %7 = vector.load %arg3[%c0_2, %c0_3, %c0_4] : memref<1x32x256xf32, #tpu.memory_space<vmem>>, vector<1x32x256xf32>
    %8 = vector.shape_cast %7 : vector<1x32x256xf32> to vector<32x256xf32>
    %c0_5 = arith.constant 0 : index
    %c0_6 = arith.constant 0 : index
    %c0_7 = arith.constant 0 : index
    %9 = vector.load %arg4[%c0_5, %c0_6, %c0_7] : memref<1x32x1xf32, #tpu.memory_space<vmem>>, vector<1x32x1xf32>
    %10 = vector.shape_cast %9 : vector<1x32x1xf32> to vector<32x1xf32>
    %11 = vector.broadcast %10 : vector<32x1xf32> to vector<32x256xf32>
    %12 = vector.broadcast %6 : vector<1x256xf32> to vector<32x256xf32>
    %13 = arith.mulf %11, %12 : vector<32x256xf32>
    %14 = arith.mulf %8, %13 : vector<32x256xf32>
    %c0_8 = arith.constant 0 : index
    %c0_9 = arith.constant 0 : index
    %c0_10 = arith.constant 0 : index
    %15 = vector.load %arg6[%c0_8, %c0_9, %c0_10] : memref<1x32x256xf32, #tpu.memory_space<vmem>>, vector<1x32x256xf32>
    %16 = vector.shape_cast %15 : vector<1x32x256xf32> to vector<32x256xf32>
    %17 = vector.shape_cast %14 : vector<32x256xf32> to vector<1x32x256xf32>
    tpu.vector_store %arg6[%c0_8, %c0_9, %c0_10], %17 {strides = array<i32>} : memref<1x32x256xf32, #tpu.memory_space<vmem>>, vector<1x32x256xf32>,
    return
  }
  func.func @transform_0(%arg0: i32, %arg1: i32, %arg2: i32) -> (i32, i32, i32) {
    %c0_i32 = arith.constant 0 : i32
    return %arg0, %arg1, %arg2 : i32, i32, i32
  }
  func.func @transform_1(%arg0: i32, %arg1: i32, %arg2: i32) -> (i32, i32, i32) {
    %c0_i32 = arith.constant 0 : i32
    %c0_i32_0 = arith.constant 0 : i32
    return %arg0, %arg1, %c0_i32 : i32, i32, i32
  }
  func.func @transform_2(%arg0: i32, %arg1: i32, %arg2: i32) -> (i32, i32, i32) {
    %c0_i32 = arith.constant 0 : i32
    %c0_i32_0 = arith.constant 0 : i32
    return %arg0, %c0_i32, %arg2 : i32, i32, i32
  }
  func.func @transform_3(%arg0: i32, %arg1: i32, %arg2: i32) -> (i32, i32, i32) {
    %c0_i32 = arith.constant 0 : i32
    return %arg0, %arg1, %arg2 : i32, i32, i32
  }
}

</mosaic_0001>

<llo_original>
// kernel: cbam_forward.4
$region0: #{cbam_forward.4}
  #allocation0 [shape = 'u32[]', space=smem, size = 0x4, offset = 0x4, fixed_abs, tag = 'smem constant byte address 0x4 - core index']
  #allocation1 [shape = 'u32[144,128]{1,0:T(1,128)}', space=vmem, size = 0x12000, scoped, tag = 'internal scratch']
  #allocation2 [shape = 'f32[8,256]{1,0:T(8,128)}', space=vmem, size = 0x2000, scoped, tag = 'scratch operand']
  #allocation3 [shape = 'f32[8,256]{1,0:T(8,128)}', space=vmem, size = 0x2000, scoped, tag = 'scratch operand']
  %s0 = inlined_call_operand.vmem [shape: f32[2,32,256], index: 0, kind: input, shape index: {}]
  %s1 = inlined_call_operand.vmem [shape: f32[2,32,1], index: 1, kind: input, shape index: {}]
  %s2 = inlined_call_operand.vmem [shape: f32[2,2,256], index: 2, kind: output, shape index: {}]
  %s3 = sld [smem:[#allocation0]]
  $region49: #{cbam_forward.4} parent=0
    _
  %s5 = ssub.s32 1, %s3
  %s6 = scalar_select 0, %s5, %s3
  loop: start=0, step=1, limit=4
  $region2: #{cbam_forward.4} parent=0 // loop_pre_header
    _
  $region3: #{cbam_forward.4} parent=0 // loop_header
    %s8 = sphi 0, %s12
    %p9 = scmp.ge.s32.totalorder %s8, 4
    %s15 = sphi 0, %s34
    %s16 = sphi 0, %s30
    %s17 = sphi 0, %s26
    %s18 = sphi 0, %s15
    %s19 = sphi 0, %s16
    %s20 = sphi 0, %s17
    %s21 = sphi 0, %s18
    %s22 = sphi 0, %s19
    %s23 = sphi 0, %s20
    %s41 = sphi 0, %s43
    %s44 = sphi 0, %s41
    %s45 = sphi 0, %s44
    %s61 = sphi 0, %s45
    %s69 = sphi 0, %s71
    %s72 = sphi 0, %s69
    %s73 = sphi 0, %s72
    %s89 = sphi 0, %s73
    %s97 = sphi 0, %s99
    %s100 = sphi 0, %s97
    %s101 = sphi 0, %s100
    %s117 = sphi 0, %s101
  $region4: #{cbam_forward.4} parent=0 // loop_header_branch
    %11 = sbr.rel (%p9) target = $region8
  $region5: #{cbam_forward.4} parent=0 // loop_body
    %s13 = ssub.s32 %s8, 1
    %s14 = ssub.s32 %s8, 2
    %s24 = sadd.s32 1, %s17
    %p25 = scmp.ge.s32.totalorder %s24, 1
    %s26 = scalar_select %p25, 0, %s24
    %s27 = sadd.s32 1, %s16
    %s28 = scalar_select %p25, %s27, %s16
    %p29 = scmp.ge.s32.totalorder %s28, 1
    %s30 = scalar_select %p29, 0, %s28
    %s31 = sadd.s32 1, %s15
    %s32 = scalar_select %p29, %s31, %s15
    %p33 = scmp.ge.s32.totalorder %s32, 2
    %s34 = scalar_select %p33, 0, %s32
    %s35 = ssub.s32 %s15, %s34
    %s36 = ssub.s32 %s17, %s26
    %s37 = sor.u32 %s35, %s36
    %s38 = ssub.s32 %s16, %s30
    %s39 = sor.u32 %s37, %s38
    %p40 = scmp.eq.s32.totalorder %s39, 0
    %s42 = sadd.s32 %s41, 1
    %s43 = scalar_select %p40, %s41, %s42
    %p46 = pneg %p40
    %p47 = scmp.eq.s32.totalorder %s8, 1
    %p48 = por %p46, %p47
    %p49 = scmp.ne.s32.totalorder %s41, %s44
    %p50 = scmp.eq.s32.totalorder %s8, 0
    %p51 = por %p49, %p50
    %p52 = scmp.ne.s32.totalorder %s41, %s44
    %p53 = scmp.eq.s32.totalorder %s13, 1
    %p54 = por %p52, %p53
    %p55 = scmp.ne.s32.totalorder %s44, %s45
    %p56 = scmp.eq.s32.totalorder %s13, 0
    %p57 = por %p55, %p56
    %p58 = scmp.ne.s32.totalorder %s44, %s45
    %p59 = scmp.eq.s32.totalorder %s14, 1
    %p60 = por %p58, %p59
    %p62 = scmp.ne.s32.totalorder %s45, %s61
    %p63 = scmp.eq.s32.totalorder %s14, 0
    %p64 = por %p62, %p63
    %s65 = ssub.s32 %s15, %s34
    %s66 = ssub.s32 %s17, %s26
    %s67 = sor.u32 %s65, %s66
    %p68 = scmp.eq.s32.totalorder %s67, 0
    %s70 = sadd.s32 %s69, 1
    %s71 = scalar_select %p68, %s69, %s70
    %p74 = pneg %p68
    %p75 = scmp.eq.s32.totalorder %s8, 1
    %p76 = por %p74, %p75
    %p77 = scmp.ne.s32.totalorder %s69, %s72
    %p78 = scmp.eq.s32.totalorder %s8, 0
    %p79 = por %p77, %p78
    %p80 = scmp.ne.s32.totalorder %s69, %s72
    %p81 = scmp.eq.s32.totalorder %s13, 1
    %p82 = por %p80, %p81
    %p83 = scmp.ne.s32.totalorder %s72, %s73
    %p84 = scmp.eq.s32.totalorder %s13, 0
    %p85 = por %p83, %p84
    %p86 = scmp.ne.s32.totalorder %s72, %s73
    %p87 = scmp.eq.s32.totalorder %s14, 1
    %p88 = por %p86, %p87
    %p90 = scmp.ne.s32.totalorder %s73, %s89
    %p91 = scmp.eq.s32.totalorder %s14, 0
    %p92 = por %p90, %p91
    %s93 = ssub.s32 %s15, %s34
    %s94 = ssub.s32 %s16, %s30
    %s95 = sor.u32 %s93, %s94
    %p96 = scmp.eq.s32.totalorder %s95, 0
    %s98 = sadd.s32 %s97, 1
    %s99 = scalar_select %p96, %s97, %s98
    %p102 = pneg %p96
    %p103 = scmp.eq.s32.totalorder %s8, 1
    %p104 = por %p102, %p103
    %p105 = scmp.ne.s32.totalorder %s97, %s100
    %p106 = scmp.eq.s32.totalorder %s8, 0
    %p107 = por %p105, %p106
    %p108 = scmp.ne.s32.totalorder %s97, %s100
    %p109 = scmp.eq.s32.totalorder %s13, 1
    %p110 = por %p108, %p109
    %p111 = scmp.ne.s32.totalorder %s100, %s101
    %p112 = scmp.eq.s32.totalorder %s13, 0
    %p113 = por %p111, %p112
    %p114 = scmp.ne.s32.totalorder %s100, %s101
    %p115 = scmp.eq.s32.totalorder %s14, 1
    %p116 = por %p114, %p115
    %p118 = scmp.ne.s32.totalorder %s101, %s117
    %p119 = scmp.eq.s32.totalorder %s14, 0
    %p120 = por %p118, %p119
    %p121 = scmp.le.s32.totalorder 1, %s8
    %p122 = scmp.lt.s32.totalorder %s8, 3
    %p123 = pnand %p121, %p122
    %p124 = pneg %p123
    // Predicated region
    $region9: #{cbam_forward.4} parent=5 // pred_check
      _
    $region10: #{cbam_forward.4} parent=5 // pred_check_branch
      %126 = sbr.rel (%p123) target = $region12
    $region11: #{cbam_forward.4} parent=5 // pred_region
      %s127 = ssub.s32 %s8, 1
    $region12: #{cbam_forward.4} parent=5 // pred_fallthru
      _
    %p128 = scmp.lt.s32.totalorder %s8, 2
    // Predicated region
    $region13: #{cbam_forward.4} parent=5 // pred_check
      %p129 = pneg %p128
    $region14: #{cbam_forward.4} parent=5 // pred_check_branch
      %131 = sbr.rel (%p129) target = $region16
    $region15: #{cbam_forward.4} parent=5 // pred_region
      // Predicated region
      $region17: #{cbam_forward.4} parent=15 // pred_check
        %p132 = pneg %p51
      $region18: #{cbam_forward.4} parent=15 // pred_check_branch
        %134 = sbr.rel (%p132) target = $region20
      $region19: #{cbam_forward.4} parent=15 // pred_region
        %s135 = smul.u32 4, %s17
        %s136 = smul.u32 2, %s16
        %p137 = scmp.lt.s32.totalorder %s15, 1
        %s138 = scalar_select %p137, %s15, 1
        %p139 = scmp.lt.s32.totalorder %s135, 3
        %s140 = scalar_select %p139, %s135, 3
        %p141 = scmp.lt.s32.totalorder %s136, 1
        %s142 = scalar_select %p141, %s136, 1
        %s143 = smul.addr %s140, 2
        %s144 = sadd.s32 %s142, %s143
        %s145 = smul.addr %s138, 8
        %s146 = sadd.s32 %s144, %s145
        %s147 = smul.addr %s146, 8
        %s148 = scalar_lea.vmem %s0, %s147
        %s149 = smul.u32 4, %s17
        %s150 = smul.u32 2, %s16
      $region20: #{cbam_forward.4} parent=15 // pred_fallthru
        _
      // Predicated region
      $region21: #{cbam_forward.4} parent=15 // pred_check
        %p151 = pneg %p79
      $region22: #{cbam_forward.4} parent=15 // pred_check_branch
        %153 = sbr.rel (%p151) target = $region24
      $region23: #{cbam_forward.4} parent=15 // pred_region
        %s154 = smul.u32 4, %s17
        %p155 = scmp.lt.s32.totalorder %s15, 1
        %s156 = scalar_select %p155, %s15, 1
        %p157 = scmp.lt.s32.totalorder %s154, 3
        %s158 = scalar_select %p157, %s154, 3
        %s159 = smul.addr %s156, 4
        %s160 = sadd.s32 %s158, %s159
        %s161 = smul.addr %s160, 8
        %s162 = scalar_lea.vmem %s1, %s161
        %s163 = smul.u32 4, %s17
      $region24: #{cbam_forward.4} parent=15 // pred_fallthru
        _
    $region16: #{cbam_forward.4} parent=5 // pred_fallthru
      _
    %p164 = scmp.le.s32.totalorder 1, %s8
    %p165 = scmp.lt.s32.totalorder %s8, 3
    %p166 = pnand %p164, %p165
    %p167 = pneg %p166
    // Predicated region
    $region25: #{cbam_forward.4} parent=5 // pred_check
      _
    $region26: #{cbam_forward.4} parent=5 // pred_check_branch
      %169 = sbr.rel (%p166) target = $region28
    $region27: #{cbam_forward.4} parent=5 // pred_region
      %s170 = ssub.s32 %s8, 1
      %s171 = smul.u32 4, %s20
      %s172 = smul.u32 2, %s19
      %p173 = scmp.lt.s32.totalorder %s18, 1
      %s174 = scalar_select %p173, %s18, 1
      %p175 = scmp.lt.s32.totalorder %s171, 3
      %s176 = scalar_select %p175, %s171, 3
      %p177 = scmp.lt.s32.totalorder %s172, 1
      %s178 = scalar_select %p177, %s172, 1
      %s179 = smul.addr %s176, 2
      %s180 = sadd.s32 %s178, %s179
      %s181 = smul.addr %s174, 8
      %s182 = sadd.s32 %s180, %s181
      %s183 = smul.addr %s182, 8
      %s184 = scalar_lea.vmem %s0, %s183
      %p185 = pneg %p57
      %p186 = pneg %p54
      %s187 = smul.u32 4, %s20
      %p188 = scmp.lt.s32.totalorder %s18, 1
      %s189 = scalar_select %p188, %s18, 1
      %p190 = scmp.lt.s32.totalorder %s187, 3
      %s191 = scalar_select %p190, %s187, 3
      %s192 = smul.addr %s189, 4
      %s193 = sadd.s32 %s191, %s192
      %s194 = smul.addr %s193, 8
      %s195 = scalar_lea.vmem %s1, %s194
      %p196 = pneg %p85
      %p197 = pneg %p82
      %p198 = pneg %p113
      %p199 = pneg %p110
      %s200 = smul.u32 2, %s19
      %p201 = scmp.lt.s32.totalorder %s18, 1
      %s202 = scalar_select %p201, %s18, 1
      %p203 = scmp.lt.s32.totalorder %s200, 1
      %s204 = scalar_select %p203, %s200, 1
      %s205 = smul.addr %s202, 2
      %s206 = sadd.s32 %s204, %s205
      %s207 = smul.addr %s206, 2
      %s208 = scalar_lea.vmem %s2, %s207
      %s209 = smul.u32 4, %s20
      %s210 = smul.u32 2, %s19
      %p211 = scmp.lt.s32.totalorder %s18, 1
      %s212 = scalar_select %p211, %s18, 1
      %p213 = scmp.lt.s32.totalorder %s209, 3
      %s214 = scalar_select %p213, %s209, 3
      %p215 = scmp.lt.s32.totalorder %s210, 1
      %s216 = scalar_select %p215, %s210, 1
      %s217 = smul.addr %s214, 2
      %s218 = sadd.s32 %s216, %s217
      %s219 = smul.addr %s212, 8
      %s220 = sadd.s32 %s218, %s219
      %s221 = smul.addr %s220, 8
      %s222 = scalar_lea.vmem %s0, %s221
      %s223 = smul.u32 4, %s20
      %s224 = smul.u32 2, %s19
      %s225 = smul.u32 4, %s20
      %p226 = scmp.lt.s32.totalorder %s18, 1
      %s227 = scalar_select %p226, %s18, 1
      %p228 = scmp.lt.s32.totalorder %s225, 3
      %s229 = scalar_select %p228, %s225, 3
      %s230 = smul.addr %s227, 4
      %s231 = sadd.s32 %s229, %s230
      %s232 = smul.addr %s231, 8
      %s233 = scalar_lea.vmem %s1, %s232
      %s234 = smul.u32 4, %s20
      %s235 = smul.u32 2, %s19
      %p236 = scmp.lt.s32.totalorder %s18, 1
      %s237 = scalar_select %p236, %s18, 1
      %p238 = scmp.lt.s32.totalorder %s235, 1
      %s239 = scalar_select %p238, %s235, 1
      %s240 = smul.addr %s237, 2
      %s241 = sadd.s32 %s239, %s240
      %s242 = smul.addr %s241, 2
      %s243 = scalar_lea.vmem %s2, %s242
      %s244 = smul.u32 2, %s19
      %p245 = scmp.eq.s32.totalorder %s20, 0
      // Predicated region
      $region29: #{cbam_forward.4} parent=27 // pred_check
        %p246 = pneg %p245
      $region30: #{cbam_forward.4} parent=27 // pred_check_branch
        %248 = sbr.rel (%p246) target = $region32
      $region31: #{cbam_forward.4} parent=27 // pred_region
        %249 = vst [vmem:[#allocation2] sm:$0xff] 0.0
        %250 = vst [vmem:[#allocation2 + $0x8] sm:$0xff] 0.0
        %251 = vst [vmem:[#allocation3] sm:$0xff] -inf
        %252 = vst [vmem:[#allocation3 + $0x8] sm:$0xff] -inf
      $region32: #{cbam_forward.4} parent=27 // pred_fallthru
        _
      %v253 = vld [vmem:[%s222] sm:$0xff]
      %v254 = vld [vmem:[%s222 + $0x8] sm:$0xff]
      %v255 = vld [vmem:[%s222 + $0x10] sm:$0xff]
      %v256 = vld [vmem:[%s222 + $0x18] sm:$0xff]
      %v257 = vld [vmem:[%s222 + $0x20] sm:$0xff]
      %v258 = vld [vmem:[%s222 + $0x28] sm:$0xff]
      %v259 = vld [vmem:[%s222 + $0x30] sm:$0xff]
      %v260 = vld [vmem:[%s222 + $0x38] sm:$0xff]
      %v261 = vld [vmem:[%s233] sm:$0xff]
      %v262 = vld [vmem:[%s233 + $0x8] sm:$0xff]
      %v263 = vld [vmem:[%s233 + $0x10] sm:$0xff]
      %v264 = vld [vmem:[%s233 + $0x18] sm:$0xff]
      %266 = vset.pattern.permute.xlu0 0
      %267 = vperm.xlu0 %266, %v261
      %v268 = vpop.permute.xlu0 %267
      %271 = vset.pattern.permute.xlu0 0
      %272 = vperm.xlu0 %271, %v262
      %v273 = vpop.permute.xlu0 %272
      %276 = vset.pattern.permute.xlu0 0
      %277 = vperm.xlu0 %276, %v263
      %v278 = vpop.permute.xlu0 %277
      %281 = vset.pattern.permute.xlu0 0
      %282 = vperm.xlu0 %281, %v264
      %v283 = vpop.permute.xlu0 %282
      %v285 = vmul.f32 %v253, %v268
      %v286 = vmul.f32 %v254, %v268
      %v287 = vmul.f32 %v255, %v273
      %v288 = vmul.f32 %v256, %v273
      %v289 = vmul.f32 %v257, %v278
      %v290 = vmul.f32 %v258, %v278
      %v291 = vmul.f32 %v259, %v283
      %v292 = vmul.f32 %v260, %v283
      %v293 = vadd.f32 %v285, %v287
      %v294 = vadd.f32 %v286, %v288
      %v295 = vmax.f32 %v285, %v287
      %v296 = vmax.f32 %v286, %v288
      %v297 = vadd.f32 %v293, %v289
      %v298 = vadd.f32 %v294, %v290
      %v299 = vmax.f32 %v295, %v289
      %v300 = vmax.f32 %v296, %v290
      %v301 = vadd.f32 %v297, %v291
      %v302 = vadd.f32 %v298, %v292
      %v303 = vmax.f32 %v299, %v291
      %v304 = vmax.f32 %v300, %v292
      %v305 = vld [vmem:[#allocation2] sm:$0xff]
      %v306 = vld [vmem:[#allocation2 + $0x8] sm:$0xff]
      %v307 = vadd.f32 %v305, %v301
      %v308 = vadd.f32 %v306, %v302
      %309 = vst [vmem:[#allocation2] sm:$0xff] %v307
      %310 = vst [vmem:[#allocation2 + $0x8] sm:$0xff] %v308
      %v311 = vld [vmem:[#allocation3] sm:$0xff]
      %v312 = vld [vmem:[#allocation3 + $0x8] sm:$0xff]
      %v313 = vmax.f32 %v311, %v303
      %v314 = vmax.f32 %v312, %v304
      %315 = vst [vmem:[#allocation3] sm:$0xff] %v313
      %316 = vst [vmem:[#allocation3 + $0x8] sm:$0xff] %v314
      // Predicated region
      $region33: #{cbam_forward.4} parent=27 // pred_check
        %p317 = pneg %p245
      $region34: #{cbam_forward.4} parent=27 // pred_check_branch
        %319 = sbr.rel (%p317) target = $region36
      $region35: #{cbam_forward.4} parent=27 // pred_region
        %v320 = vld [vmem:[#allocation2] sm:$0xff]
        %v321 = vld [vmem:[#allocation2 + $0x8] sm:$0xff]
        %v322 = vrot.slane %v320, 4
        %v323 = vadd.f32 %v320, %v322
        %v324 = vrot.slane %v323, 2
        %v325 = vadd.f32 %v323, %v324
        %v326 = vrot.slane %v325, 1
        %v327 = vadd.f32 %v325, %v326
        %v328 = vrot.slane %v321, 4
        %v329 = vadd.f32 %v321, %v328
        %v330 = vrot.slane %v329, 2
        %v331 = vadd.f32 %v329, %v330
        %v332 = vrot.slane %v331, 1
        %v333 = vadd.f32 %v331, %v332
        %v334 = vmul.f32 %v327, 0.03125
        %v335 = vmul.f32 %v333, 0.03125
        %v336 = vld [vmem:[#allocation3] sm:$0xff]
        %v337 = vld [vmem:[#allocation3 + $0x8] sm:$0xff]
        %v338 = vrot.slane %v336, 4
        %v339 = vmax.f32 %v336, %v338
        %v340 = vrot.slane %v339, 2
        %v341 = vmax.f32 %v339, %v340
        %v342 = vrot.slane %v341, 1
        %v343 = vmax.f32 %v341, %v342
        %v344 = vrot.slane %v337, 4
        %v345 = vmax.f32 %v337, %v344
        %v346 = vrot.slane %v345, 2
        %v347 = vmax.f32 %v345, %v346
        %v348 = vrot.slane %v347, 1
        %v349 = vmax.f32 %v347, %v348
        %vm350 = vcmask 1040384
        %v351 = vsel %vm350, %v334, %v343
        %v352 = vsel %vm350, %v335, %v349
        %v355 = vcombine.low %v351, %v352
        %v357 = vunpack.c.l.s4 1983009808
        %v358 = vunpack.c.0.s8 %v357
        %v359 = vlaneseq
        %v360 = vshrl.u32 %v359, 7
        %v361 = vsub.s32 %v358, %v360
        %v362 = vrot.slane %v355, %v361
        %364 = vst [vmem:[%s243] sm:$0xf] %v362
      $region36: #{cbam_forward.4} parent=27 // pred_fallthru
        _
      %s365 = smul.u32 2, %s19
      %p366 = scmp.lt.s32.totalorder %s18, 1
      %s367 = scalar_select %p366, %s18, 1
      %p368 = scmp.lt.s32.totalorder %s365, 1
      %s369 = scalar_select %p368, %s365, 1
      %s370 = smul.addr %s367, 2
      %s371 = sadd.s32 %s369, %s370
      %s372 = smul.addr %s371, 2
      %s373 = scalar_lea.vmem %s2, %s372
      // Predicated region
      $region37: #{cbam_forward.4} parent=27 // pred_check
        %p374 = pneg %p110
      $region38: #{cbam_forward.4} parent=27 // pred_check_branch
        %376 = sbr.rel (%p374) target = $region40
      $region39: #{cbam_forward.4} parent=27 // pred_region
        %s377 = smul.u32 2, %s19
      $region40: #{cbam_forward.4} parent=27 // pred_fallthru
        _
    $region28: #{cbam_forward.4} parent=5 // pred_fallthru
      _
    %p378 = scmp.le.s32.totalorder 2, %s8
    // Predicated region
    $region41: #{cbam_forward.4} parent=5 // pred_check
      %p379 = pneg %p378
    $region42: #{cbam_forward.4} parent=5 // pred_check_branch
      %381 = sbr.rel (%p379) target = $region44
    $region43: #{cbam_forward.4} parent=5 // pred_region
      %s382 = ssub.s32 %s8, 2
      // Predicated region
      $region45: #{cbam_forward.4} parent=43 // pred_check
        %p383 = pneg %p116
      $region46: #{cbam_forward.4} parent=43 // pred_check_branch
        %385 = sbr.rel (%p383) target = $region48
      $region47: #{cbam_forward.4} parent=43 // pred_region
        %s386 = smul.u32 2, %s22
        %p387 = scmp.lt.s32.totalorder %s21, 1
        %s388 = scalar_select %p387, %s21, 1
        %p389 = scmp.lt.s32.totalorder %s386, 1
        %s390 = scalar_select %p389, %s386, 1
        %s391 = smul.addr %s388, 2
        %s392 = sadd.s32 %s390, %s391
        %s393 = smul.addr %s392, 2
        %s394 = scalar_lea.vmem %s2, %s393
      $region48: #{cbam_forward.4} parent=43 // pred_fallthru
        _
    $region44: #{cbam_forward.4} parent=5 // pred_fallthru
      _
  $region6: #{cbam_forward.4} parent=0 // loop_footer
    %s12 = sadd.s32 1, %s8
  $region7: #{cbam_forward.4} parent=0 // loop_footer_branch
    %7 = sbr.rel target = $region3
  $region8: #{cbam_forward.4} parent=0 // loop_exit
    _

// kernel: cbam_forward.3
$region0: #{cbam_forward.3}
  #allocation0 [shape = 'u32[]', space=smem, size = 0x4, offset = 0x4, fixed_abs, tag = 'smem constant byte address 0x4 - core index']
  #allocation1 [shape = 'u32[144,128]{1,0:T(1,128)}', space=vmem, size = 0x12000, scoped, tag = 'internal scratch']
  #allocation2 [shape = 'f32[32,128]{1,0:T(8,128)}', space=vmem, size = 0x4000, scoped, tag = 'scratch operand']
  #allocation3 [shape = 'f32[32,128]{1,0:T(8,128)}', space=vmem, size = 0x4000, scoped, tag = 'scratch operand']
  %s0 = inlined_call_operand.vmem [shape: f32[2,32,256], index: 0, kind: input, shape index: {}]
  %s1 = inlined_call_operand.vmem [shape: f32[2,32], index: 1, kind: input, shape index: {}]
  %s2 = inlined_call_operand.vmem [shape: f32[2,1], index: 2, kind: input, shape index: {}]
  %s3 = inlined_call_operand.vmem [shape: f32[32,2], index: 3, kind: input, shape index: {}]
  %s4 = inlined_call_operand.vmem [shape: f32[32,1], index: 4, kind: input, shape index: {}]
  %s5 = inlined_call_operand.vmem [shape: f32[2,32,1], index: 5, kind: output, shape index: {}]
  %s6 = sld [smem:[#allocation0]]
  $region61: #{cbam_forward.3} parent=0
    _
  %s8 = ssub.s32 1, %s6
  %s9 = scalar_select 0, %s8, %s6
  loop: start=0, step=1, limit=4
  $region2: #{cbam_forward.3} parent=0 // loop_pre_header
    _
  $region3: #{cbam_forward.3} parent=0 // loop_header
    %s11 = sphi 0, %s15
    %p12 = scmp.ge.s32.totalorder %s11, 4
    %s18 = sphi 0, %s30
    %s19 = sphi 0, %s26
    %s20 = sphi 0, %s18
    %s21 = sphi 0, %s19
    %s22 = sphi 0, %s20
    %s23 = sphi 0, %s21
    %s35 = sphi 0, %s37
    %s38 = sphi 0, %s35
    %s39 = sphi 0, %s38
    %s55 = sphi 0, %s39
    %s59 = sphi 0, %s59
    %s61 = sphi 0, %s59
    %s62 = sphi 0, %s61
    %s76 = sphi 0, %s62
    %s80 = sphi 0, %s80
    %s82 = sphi 0, %s80
    %s83 = sphi 0, %s82
    %s97 = sphi 0, %s83
    %s101 = sphi 0, %s101
    %s103 = sphi 0, %s101
    %s104 = sphi 0, %s103
    %s118 = sphi 0, %s104
    %s122 = sphi 0, %s122
    %s124 = sphi 0, %s122
    %s125 = sphi 0, %s124
    %s139 = sphi 0, %s125
    %s145 = sphi 0, %s147
    %s148 = sphi 0, %s145
    %s149 = sphi 0, %s148
    %s165 = sphi 0, %s149
  $region4: #{cbam_forward.3} parent=0 // loop_header_branch
    %14 = sbr.rel (%p12) target = $region8
  $region5: #{cbam_forward.3} parent=0 // loop_body
    %s16 = ssub.s32 %s11, 1
    %s17 = ssub.s32 %s11, 2
    %s24 = sadd.s32 1, %s19
    %p25 = scmp.ge.s32.totalorder %s24, 1
    %s26 = scalar_select %p25, 0, %s24
    %s27 = sadd.s32 1, %s18
    %s28 = scalar_select %p25, %s27, %s18
    %p29 = scmp.ge.s32.totalorder %s28, 2
    %s30 = scalar_select %p29, 0, %s28
    %s31 = ssub.s32 %s18, %s30
    %s32 = ssub.s32 %s19, %s26
    %s33 = sor.u32 %s31, %s32
    %p34 = scmp.eq.s32.totalorder %s33, 0
    %s36 = sadd.s32 %s35, 1
    %s37 = scalar_select %p34, %s35, %s36
    %p40 = pneg %p34
    %p41 = scmp.eq.s32.totalorder %s11, 1
    %p42 = por %p40, %p41
    %p43 = scmp.ne.s32.totalorder %s35, %s38
    %p44 = scmp.eq.s32.totalorder %s11, 0
    %p45 = por %p43, %p44
    %p46 = scmp.ne.s32.totalorder %s35, %s38
    %p47 = scmp.eq.s32.totalorder %s16, 1
    %p48 = por %p46, %p47
    %p49 = scmp.ne.s32.totalorder %s38, %s39
    %p50 = scmp.eq.s32.totalorder %s16, 0
    %p51 = por %p49, %p50
    %p52 = scmp.ne.s32.totalorder %s38, %s39
    %p53 = scmp.eq.s32.totalorder %s17, 1
    %p54 = por %p52, %p53
    %p56 = scmp.ne.s32.totalorder %s39, %s55
    %p57 = scmp.eq.s32.totalorder %s17, 0
    %p58 = por %p56, %p57
    %s60 = sadd.s32 %s59, 1
    %p63 = scmp.eq.s32.totalorder %s11, 1
    %p64 = scmp.ne.s32.totalorder %s59, %s61
    %p65 = scmp.eq.s32.totalorder %s11, 0
    %p66 = por %p64, %p65
    %p67 = scmp.ne.s32.totalorder %s59, %s61
    %p68 = scmp.eq.s32.totalorder %s16, 1
    %p69 = por %p67, %p68
    %p70 = scmp.ne.s32.totalorder %s61, %s62
    %p71 = scmp.eq.s32.totalorder %s16, 0
    %p72 = por %p70, %p71
    %p73 = scmp.ne.s32.totalorder %s61, %s62
    %p74 = scmp.eq.s32.totalorder %s17, 1
    %p75 = por %p73, %p74
    %p77 = scmp.ne.s32.totalorder %s62, %s76
    %p78 = scmp.eq.s32.totalorder %s17, 0
    %p79 = por %p77, %p78
    %s81 = sadd.s32 %s80, 1
    %p84 = scmp.eq.s32.totalorder %s11, 1
    %p85 = scmp.ne.s32.totalorder %s80, %s82
    %p86 = scmp.eq.s32.totalorder %s11, 0
    %p87 = por %p85, %p86
    %p88 = scmp.ne.s32.totalorder %s80, %s82
    %p89 = scmp.eq.s32.totalorder %s16, 1
    %p90 = por %p88, %p89
    %p91 = scmp.ne.s32.totalorder %s82, %s83
    %p92 = scmp.eq.s32.totalorder %s16, 0
    %p93 = por %p91, %p92
    %p94 = scmp.ne.s32.totalorder %s82, %s83
    %p95 = scmp.eq.s32.totalorder %s17, 1
    %p96 = por %p94, %p95
    %p98 = scmp.ne.s32.totalorder %s83, %s97
    %p99 = scmp.eq.s32.totalorder %s17, 0
    %p100 = por %p98, %p99
    %s102 = sadd.s32 %s101, 1
    %p105 = scmp.eq.s32.totalorder %s11, 1
    %p106 = scmp.ne.s32.totalorder %s101, %s103
    %p107 = scmp.eq.s32.totalorder %s11, 0
    %p108 = por %p106, %p107
    %p109 = scmp.ne.s32.totalorder %s101, %s103
    %p110 = scmp.eq.s32.totalorder %s16, 1
    %p111 = por %p109, %p110
    %p112 = scmp.ne.s32.totalorder %s103, %s104
    %p113 = scmp.eq.s32.totalorder %s16, 0
    %p114 = por %p112, %p113
    %p115 = scmp.ne.s32.totalorder %s103, %s104
    %p116 = scmp.eq.s32.totalorder %s17, 1
    %p117 = por %p115, %p116
    %p119 = scmp.ne.s32.totalorder %s104, %s118
    %p120 = scmp.eq.s32.totalorder %s17, 0
    %p121 = por %p119, %p120
    %s123 = sadd.s32 %s122, 1
    %p126 = scmp.eq.s32.totalorder %s11, 1
    %p127 = scmp.ne.s32.totalorder %s122, %s124
    %p128 = scmp.eq.s32.totalorder %s11, 0
    %p129 = por %p127, %p128
    %p130 = scmp.ne.s32.totalorder %s122, %s124
    %p131 = scmp.eq.s32.totalorder %s16, 1
    %p132 = por %p130, %p131
    %p133 = scmp.ne.s32.totalorder %s124, %s125
    %p134 = scmp.eq.s32.totalorder %s16, 0
    %p135 = por %p133, %p134
    %p136 = scmp.ne.s32.totalorder %s124, %s125
    %p137 = scmp.eq.s32.totalorder %s17, 1
    %p138 = por %p136, %p137
    %p140 = scmp.ne.s32.totalorder %s125, %s139
    %p141 = scmp.eq.s32.totalorder %s17, 0
    %p142 = por %p140, %p141
    %s143 = ssub.s32 %s18, %s30
    %p144 = scmp.eq.s32.totalorder %s143, 0
    %s146 = sadd.s32 %s145, 1
    %s147 = scalar_select %p144, %s145, %s146
    %p150 = pneg %p144
    %p151 = scmp.eq.s32.totalorder %s11, 1
    %p152 = por %p150, %p151
    %p153 = scmp.ne.s32.totalorder %s145, %s148
    %p154 = scmp.eq.s32.totalorder %s11, 0
    %p155 = por %p153, %p154
    %p156 = scmp.ne.s32.totalorder %s145, %s148
    %p157 = scmp.eq.s32.totalorder %s16, 1
    %p158 = por %p156, %p157
    %p159 = scmp.ne.s32.totalorder %s148, %s149
    %p160 = scmp.eq.s32.totalorder %s16, 0
    %p161 = por %p159, %p160
    %p162 = scmp.ne.s32.totalorder %s148, %s149
    %p163 = scmp.eq.s32.totalorder %s17, 1
    %p164 = por %p162, %p163
    %p166 = scmp.ne.s32.totalorder %s149, %s165
    %p167 = scmp.eq.s32.totalorder %s17, 0
    %p168 = por %p166, %p167
    %p169 = scmp.le.s32.totalorder 1, %s11
    %p170 = scmp.lt.s32.totalorder %s11, 3
    %p171 = pnand %p169, %p170
    %p172 = pneg %p171
    // Predicated region
    $region9: #{cbam_forward.3} parent=5 // pred_check
      _
    $region10: #{cbam_forward.3} parent=5 // pred_check_branch
      %174 = sbr.rel (%p171) target = $region12
    $region11: #{cbam_forward.3} parent=5 // pred_region
      %s175 = ssub.s32 %s11, 1
      // Predicated region
      $region13: #{cbam_forward.3} parent=11 // pred_check
        %p176 = pneg %p72
      $region14: #{cbam_forward.3} parent=11 // pred_check_branch
        %178 = sbr.rel (%p176) target = $region16
      $region15: #{cbam_forward.3} parent=11 // pred_region
        _
      $region16: #{cbam_forward.3} parent=11 // pred_fallthru
        _
      // Predicated region
      $region17: #{cbam_forward.3} parent=11 // pred_check
        %p179 = pneg %p93
      $region18: #{cbam_forward.3} parent=11 // pred_check_branch
        %181 = sbr.rel (%p179) target = $region20
      $region19: #{cbam_forward.3} parent=11 // pred_region
        _
      $region20: #{cbam_forward.3} parent=11 // pred_fallthru
        _
      // Predicated region
      $region21: #{cbam_forward.3} parent=11 // pred_check
        %p182 = pneg %p114
      $region22: #{cbam_forward.3} parent=11 // pred_check_branch
        %184 = sbr.rel (%p182) target = $region24
      $region23: #{cbam_forward.3} parent=11 // pred_region
        _
      $region24: #{cbam_forward.3} parent=11 // pred_fallthru
        _
      // Predicated region
      $region25: #{cbam_forward.3} parent=11 // pred_check
        %p185 = pneg %p135
      $region26: #{cbam_forward.3} parent=11 // pred_check_branch
        %187 = sbr.rel (%p185) target = $region28
      $region27: #{cbam_forward.3} parent=11 // pred_region
        _
      $region28: #{cbam_forward.3} parent=11 // pred_fallthru
        _
    $region12: #{cbam_forward.3} parent=5 // pred_fallthru
      _
    %p188 = scmp.lt.s32.totalorder %s11, 2
    // Predicated region
    $region29: #{cbam_forward.3} parent=5 // pred_check
      %p189 = pneg %p188
    $region30: #{cbam_forward.3} parent=5 // pred_check_branch
      %191 = sbr.rel (%p189) target = $region32
    $region31: #{cbam_forward.3} parent=5 // pred_region
      // Predicated region
      $region33: #{cbam_forward.3} parent=31 // pred_check
        %p192 = pneg %p45
      $region34: #{cbam_forward.3} parent=31 // pred_check_branch
        %194 = sbr.rel (%p192) target = $region36
      $region35: #{cbam_forward.3} parent=31 // pred_region
        %s195 = smul.u32 2, %s19
        %p196 = scmp.lt.s32.totalorder %s18, 1
        %s197 = scalar_select %p196, %s18, 1
        %p198 = scmp.lt.s32.totalorder %s195, 1
        %s199 = scalar_select %p198, %s195, 1
        %s200 = smul.addr %s197, 8
        %s201 = sadd.s32 %s199, %s200
        %s202 = smul.addr %s201, 8
        %s203 = scalar_lea.vmem %s0, %s202
        %s204 = smul.u32 2, %s19
      $region36: #{cbam_forward.3} parent=31 // pred_fallthru
        _
    $region32: #{cbam_forward.3} parent=5 // pred_fallthru
      _
    %p205 = scmp.le.s32.totalorder 1, %s11
    %p206 = scmp.lt.s32.totalorder %s11, 3
    %p207 = pnand %p205, %p206
    %p208 = pneg %p207
    // Predicated region
    $region37: #{cbam_forward.3} parent=5 // pred_check
      _
    $region38: #{cbam_forward.3} parent=5 // pred_check_branch
      %210 = sbr.rel (%p207) target = $region40
    $region39: #{cbam_forward.3} parent=5 // pred_region
      %s211 = ssub.s32 %s11, 1
      %s212 = smul.u32 2, %s21
      %p213 = scmp.lt.s32.totalorder %s20, 1
      %s214 = scalar_select %p213, %s20, 1
      %p215 = scmp.lt.s32.totalorder %s212, 1
      %s216 = scalar_select %p215, %s212, 1
      %s217 = smul.addr %s214, 8
      %s218 = sadd.s32 %s216, %s217
      %s219 = smul.addr %s218, 8
      %s220 = scalar_lea.vmem %s0, %s219
      %p221 = pneg %p51
      %p222 = pneg %p48
      %p223 = pneg %p72
      %p224 = pneg %p69
      %p225 = pneg %p93
      %p226 = pneg %p90
      %p227 = pneg %p114
      %p228 = pneg %p111
      %p229 = pneg %p135
      %p230 = pneg %p132
      %p231 = pneg %p161
      %p232 = pneg %p158
      %p233 = scmp.lt.s32.totalorder %s20, 1
      %s234 = scalar_select %p233, %s20, 1
      %s235 = smul.addr %s234, 4
      %s236 = smul.addr %s235, 8
      %s237 = scalar_lea.vmem %s5, %s236
      %s238 = smul.u32 2, %s21
      %p239 = scmp.lt.s32.totalorder %s20, 1
      %s240 = scalar_select %p239, %s20, 1
      %p241 = scmp.lt.s32.totalorder %s238, 1
      %s242 = scalar_select %p241, %s238, 1
      %s243 = smul.addr %s240, 8
      %s244 = sadd.s32 %s242, %s243
      %s245 = smul.addr %s244, 8
      %s246 = scalar_lea.vmem %s0, %s245
      %s247 = smul.u32 2, %s21
      %p248 = scmp.lt.s32.totalorder %s20, 1
      %s249 = scalar_select %p248, %s20, 1
      %s250 = smul.addr %s249, 4
      %s251 = smul.addr %s250, 8
      %s252 = scalar_lea.vmem %s5, %s251
      %p253 = scmp.eq.s32.totalorder %s21, 0
      // Predicated region
      $region41: #{cbam_forward.3} parent=39 // pred_check
        %p254 = pneg %p253
      $region42: #{cbam_forward.3} parent=39 // pred_check_branch
        %256 = sbr.rel (%p254) target = $region44
      $region43: #{cbam_forward.3} parent=39 // pred_region
        %257 = vst [vmem:[#allocation2] sm:$0xff] 0.0
        %258 = vst [vmem:[#allocation2 + $0x8] sm:$0xff] 0.0
        %259 = vst [vmem:[#allocation2 + $0x10] sm:$0xff] 0.0
        %260 = vst [vmem:[#allocation2 + $0x18] sm:$0xff] 0.0
        %261 = vst [vmem:[#allocation3] sm:$0xff] -inf
        %262 = vst [vmem:[#allocation3 + $0x8] sm:$0xff] -inf
        %263 = vst [vmem:[#allocation3 + $0x10] sm:$0xff] -inf
        %264 = vst [vmem:[#allocation3 + $0x18] sm:$0xff] -inf
      $region44: #{cbam_forward.3} parent=39 // pred_fallthru
        _
      %v265 = vld [vmem:[%s246] sm:$0xff]
      %v266 = vld [vmem:[%s246 + $0x8] sm:$0xff]
      %v267 = vld [vmem:[%s246 + $0x10] sm:$0xff]
      %v268 = vld [vmem:[%s246 + $0x18] sm:$0xff]
      %v269 = vld [vmem:[%s246 + $0x20] sm:$0xff]
      %v270 = vld [vmem:[%s246 + $0x28] sm:$0xff]
      %v271 = vld [vmem:[%s246 + $0x30] sm:$0xff]
      %v272 = vld [vmem:[%s246 + $0x38] sm:$0xff]
      %v273 = vadd.f32 %v265, %v266
      %v274 = vadd.f32 %v267, %v268
      %v275 = vadd.f32 %v269, %v270
      %v276 = vadd.f32 %v271, %v272
      %v277 = vmax.f32 %v265, %v266
      %v278 = vmax.f32 %v267, %v268
      %v279 = vmax.f32 %v269, %v270
      %v280 = vmax.f32 %v271, %v272
      %v281 = vld [vmem:[#allocation2] sm:$0xff]
      %v282 = vld [vmem:[#allocation2 + $0x8] sm:$0xff]
      %v283 = vld [vmem:[#allocation2 + $0x10] sm:$0xff]
      %v284 = vld [vmem:[#allocation2 + $0x18] sm:$0xff]
      %v285 = vadd.f32 %v281, %v273
      %v286 = vadd.f32 %v282, %v274
      %v287 = vadd.f32 %v283, %v275
      %v288 = vadd.f32 %v284, %v276
      %289 = vst [vmem:[#allocation2] sm:$0xff] %v285
      %290 = vst [vmem:[#allocation2 + $0x8] sm:$0xff] %v286
      %291 = vst [vmem:[#allocation2 + $0x10] sm:$0xff] %v287
      %292 = vst [vmem:[#allocation2 + $0x18] sm:$0xff] %v288
      %v293 = vld [vmem:[#allocation3] sm:$0xff]
      %v294 = vld [vmem:[#allocation3 + $0x8] sm:$0xff]
      %v295 = vld [vmem:[#allocation3 + $0x10] sm:$0xff]
      %v296 = vld [vmem:[#allocation3 + $0x18] sm:$0xff]
      %v297 = vmax.f32 %v293, %v277
      %v298 = vmax.f32 %v294, %v278
      %v299 = vmax.f32 %v295, %v279
      %v300 = vmax.f32 %v296, %v280
      %301 = vst [vmem:[#allocation3] sm:$0xff] %v297
      %302 = vst [vmem:[#allocation3 + $0x8] sm:$0xff] %v298
      %303 = vst [vmem:[#allocation3 + $0x10] sm:$0xff] %v299
      %304 = vst [vmem:[#allocation3 + $0x18] sm:$0xff] %v300
      // Predicated region
      $region45: #{cbam_forward.3} parent=39 // pred_check
        %p305 = pneg %p253
      $region46: #{cbam_forward.3} parent=39 // pred_check_branch
        %307 = sbr.rel (%p305) target = $region48
      $region47: #{cbam_forward.3} parent=39 // pred_region
        %v308 = vld [vmem:[#allocation2] sm:$0xff]
        %v309 = vld [vmem:[#allocation2 + $0x8] sm:$0xff]
        %v310 = vld [vmem:[#allocation2 + $0x10] sm:$0xff]
        %v311 = vld [vmem:[#allocation2 + $0x18] sm:$0xff]
        %312 = vadd.xlane.f32.xlu0 %v308
        %v313 = vpop.xlane.xlu0 %312
        %314 = vadd.xlane.f32.xlu0 %v309
        %v315 = vpop.xlane.xlu0 %314
        %316 = vadd.xlane.f32.xlu0 %v310
        %v317 = vpop.xlane.xlu0 %316
        %318 = vadd.xlane.f32.xlu0 %v311
        %v319 = vpop.xlane.xlu0 %318
        %v320 = vmul.f32 %v313, 0.00390625
        %v321 = vmul.f32 %v315, 0.00390625
        %v322 = vmul.f32 %v317, 0.00390625
        %v323 = vmul.f32 %v319, 0.00390625
        %v324 = vld [vmem:[#allocation3] sm:$0xff]
        %v325 = vld [vmem:[#allocation3 + $0x8] sm:$0xff]
        %v326 = vld [vmem:[#allocation3 + $0x10] sm:$0xff]
        %v327 = vld [vmem:[#allocation3 + $0x18] sm:$0xff]
        %328 = vmax.xlane.f32.xlu0 %v324
        %v329 = vpop.xlane.xlu0 %328
        %330 = vmax.xlane.f32.xlu0 %v325
        %v331 = vpop.xlane.xlu0 %330
        %332 = vmax.xlane.f32.xlu0 %v326
        %v333 = vpop.xlane.xlu0 %332
        %334 = vmax.xlane.f32.xlu0 %v327
        %v335 = vpop.xlane.xlu0 %334
        %v336 = vld [vmem:[%s1] sm:$0x3]
        %v337 = vld [vmem:[%s2] sm:$0x3]
        %vm338 = vcmask 261120
        %v340 = vsel %vm338, %v336, 0
        %342 = vmatprep.subr.mxu0 0.0
        %343 = vmatpush1.msra.mxu0 0.0
        %344 = vmatprep.subr.mxu0 0.0
        %345 = vmatpush1.msra.mxu0 0.0
        %346 = vmatprep.subr.mxu0 0.0
        %347 = vmatpush1.msra.mxu0 0.0
        %348 = vmatprep.subr.mxu0 0.0
        %349 = vmatpush1.msra.mxu0 0.0
        %350 = vmatprep.subr.mxu0 0.0
        %351 = vmatpush1.msra.mxu0 0.0
        %352 = vmatprep.subr.mxu0 0.0
        %353 = vmatpush1.msra.mxu0 0.0
        %354 = vmatprep.subr.mxu0 0.0
        %355 = vmatpush1.msra.mxu0 0.0
        %356 = vmatprep.subr.mxu0 0.0
        %357 = vmatpush1.msra.mxu0 0.0
        %358 = vmatprep.subr.mxu0 0.0
        %359 = vmatpush1.msra.mxu0 0.0
        %360 = vmatprep.subr.mxu0 0.0
        %361 = vmatpush1.msra.mxu0 0.0
        %362 = vmatprep.subr.mxu0 0.0
        %363 = vmatpush1.msra.mxu0 0.0
        %364 = vmatprep.subr.mxu0 0.0
        %365 = vmatpush1.msra.mxu0 0.0
        %366 = vmatprep.subr.mxu0 0.0
        %367 = vmatpush1.msra.mxu0 %v323
        %368 = vmatprep.subr.mxu0 0.0
        %369 = vmatpush1.msra.mxu0 %v322
        %370 = vmatprep.subr.mxu0 0.0
        %371 = vmatpush1.msra.mxu0 %v321
        %372 = vmatprep.subr.mxu0 0.0
        %373 = vmatpush1.msra.mxu0 %v320
        %374 = vmatprep.subr.mxu0 0.0
        %375 = vmatpush2.msra.mxu0 0.0
        %376 = vmatprep.subr.mxu0 0.0
        %377 = vmatpush2.msra.mxu0 0.0
        %378 = vmatprep.subr.mxu0 0.0
        %379 = vmatpush2.msra.mxu0 0.0
        %380 = vmatprep.subr.mxu0 0.0
        %381 = vmatpush2.msra.mxu0 0.0
        %382 = vmatprep.subr.mxu0 0.0
        %383 = vmatpush2.msra.mxu0 0.0
        %384 = vmatprep.subr.mxu0 0.0
        %385 = vmatpush2.msra.mxu0 0.0
        %386 = vmatprep.subr.mxu0 0.0
        %387 = vmatpush2.msra.mxu0 0.0
        %388 = vmatprep.subr.mxu0 0.0
        %389 = vmatpush2.msra.mxu0 0.0
        %390 = vmatprep.subr.mxu0 0.0
        %391 = vmatpush2.msra.mxu0 0.0
        %392 = vmatprep.subr.mxu0 0.0
        %393 = vmatpush2.msra.mxu0 0.0
        %394 = vmatprep.subr.mxu0 0.0
        %395 = vmatpush2.msra.mxu0 0.0
        %396 = vmatprep.subr.mxu0 0.0
        %397 = vmatpush2.msra.mxu0 0.0
        %398 = vmatprep.subr.mxu0 0.0
        %399 = vmatpush2.msra.mxu0 0.0
        %400 = vmatprep.subr.mxu0 0.0
        %401 = vmatpush2.msra.mxu0 0.0
        %402 = vmatprep.subr.mxu0 0.0
        %403 = vmatpush2.msra.mxu0 0.0
        %404 = vmatprep.subr.mxu0 0.0
        %405 = vmatpush2.msra.mxu0 0.0
        %406 = vmatprep.mubr.f32.mxu0 0.0
        %407 = vmatmul.mubr.f32.gmra.mxu0 %v340
        %v408 = vpop.f32.mrf.mxu0
        %v409 = vadd.f32 %v337, %v408
        %v410 = vpop.f32.mrf.mxu0
        %411 = vdwg.mxu0
        %v412 = vmax.f32 %v409, 0.0
        %v413 = vld [vmem:[%s3] sm:$0xff]
        %v414 = vld [vmem:[%s3 + $0x8] sm:$0xff]
        %v415 = vld [vmem:[%s3 + $0x10] sm:$0xff]
        %v416 = vld [vmem:[%s3 + $0x18] sm:$0xff]
        %v417 = vld [vmem:[%s4] sm:$0xff]
        %v418 = vld [vmem:[%s4 + $0x8] sm:$0xff]
        %v419 = vld [vmem:[%s4 + $0x10] sm:$0xff]
        %v420 = vld [vmem:[%s4 + $0x18] sm:$0xff]
        %vm421 = vcmask 15360
        %v423 = vsel %vm421, %v413, 0
        %v426 = vsel %vm421, %v414, 0
        %v429 = vsel %vm421, %v415, 0
        %v432 = vsel %vm421, %v416, 0
        %vm434 = vcmask 1041408
        %v436 = vsel %vm434, %v412, 0
        %438 = vmatprep.subr.mxu0 0.0
        %439 = vmatpush1.msra.mxu0 0.0
        %440 = vmatprep.subr.mxu0 0.0
        %441 = vmatpush1.msra.mxu0 0.0
        %442 = vmatprep.subr.mxu0 0.0
        %443 = vmatpush1.msra.mxu0 0.0
        %444 = vmatprep.subr.mxu0 0.0
        %445 = vmatpush1.msra.mxu0 0.0
        %446 = vmatprep.subr.mxu0 0.0
        %447 = vmatpush1.msra.mxu0 0.0
        %448 = vmatprep.subr.mxu0 0.0
        %449 = vmatpush1.msra.mxu0 0.0
        %450 = vmatprep.subr.mxu0 0.0
        %451 = vmatpush1.msra.mxu0 0.0
        %452 = vmatprep.subr.mxu0 0.0
        %453 = vmatpush1.msra.mxu0 0.0
        %454 = vmatprep.subr.mxu0 0.0
        %455 = vmatpush1.msra.mxu0 0.0
        %456 = vmatprep.subr.mxu0 0.0
        %457 = vmatpush1.msra.mxu0 0.0
        %458 = vmatprep.subr.mxu0 0.0
        %459 = vmatpush1.msra.mxu0 0.0
        %460 = vmatprep.subr.mxu0 0.0
        %461 = vmatpush1.msra.mxu0 0.0
        %462 = vmatprep.subr.mxu0 0.0
        %463 = vmatpush1.msra.mxu0 0.0
        %464 = vmatprep.subr.mxu0 0.0
        %465 = vmatpush1.msra.mxu0 0.0
        %466 = vmatprep.subr.mxu0 0.0
        %467 = vmatpush1.msra.mxu0 0.0
        %468 = vmatprep.subr.mxu0 0.0
        %469 = vmatpush1.msra.mxu0 %v436
        %470 = vmatprep.subr.mxu0 0.0
        %471 = vmatpush2.msra.mxu0 0.0
        %472 = vmatprep.subr.mxu0 0.0
        %473 = vmatpush2.msra.mxu0 0.0
        %474 = vmatprep.subr.mxu0 0.0
        %475 = vmatpush2.msra.mxu0 0.0
        %476 = vmatprep.subr.mxu0 0.0
        %477 = vmatpush2.msra.mxu0 0.0
        %478 = vmatprep.subr.mxu0 0.0
        %479 = vmatpush2.msra.mxu0 0.0
        %480 = vmatprep.subr.mxu0 0.0
        %481 = vmatpush2.msra.mxu0 0.0
        %482 = vmatprep.subr.mxu0 0.0
        %483 = vmatpush2.msra.mxu0 0.0
        %484 = vmatprep.subr.mxu0 0.0
        %485 = vmatpush2.msra.mxu0 0.0
        %486 = vmatprep.subr.mxu0 0.0
        %487 = vmatpush2.msra.mxu0 0.0
        %488 = vmatprep.subr.mxu0 0.0
        %489 = vmatpush2.msra.mxu0 0.0
        %490 = vmatprep.subr.mxu0 0.0
        %491 = vmatpush2.msra.mxu0 0.0
        %492 = vmatprep.subr.mxu0 0.0
        %493 = vmatpush2.msra.mxu0 0.0
        %494 = vmatprep.subr.mxu0 0.0
        %495 = vmatpush2.msra.mxu0 0.0
        %496 = vmatprep.subr.mxu0 0.0
        %497 = vmatpush2.msra.mxu0 0.0
        %498 = vmatprep.subr.mxu0 0.0
        %499 = vmatpush2.msra.mxu0 0.0
        %500 = vmatprep.subr.mxu0 0.0
        %501 = vmatpush2.msra.mxu0 0.0
        %502 = vmatprep.mubr.f32.mxu0 0.0
        %503 = vmatmul.mubr.f32.gmra.mxu0 %v423
        %v504 = vpop.f32.mrf.mxu0
        %v505 = vadd.f32 %v417, %v504
        %v506 = vpop.f32.mrf.mxu0
        %507 = vmatprep.mubr.f32.mxu0 0.0
        %508 = vmatmul.mubr.f32.gmra.mxu0 %v426
        %v509 = vpop.f32.mrf.mxu0
        %v510 = vadd.f32 %v418, %v509
        %v511 = vpop.f32.mrf.mxu0
        %512 = vmatprep.mubr.f32.mxu0 0.0
        %513 = vmatmul.mubr.f32.gmra.mxu0 %v429
        %v514 = vpop.f32.mrf.mxu0
        %v515 = vadd.f32 %v419, %v514
        %v516 = vpop.f32.mrf.mxu0
        %517 = vmatprep.mubr.f32.mxu0 0.0
        %518 = vmatmul.mubr.f32.gmra.mxu0 %v432
        %v519 = vpop.f32.mrf.mxu0
        %v520 = vadd.f32 %v420, %v519
        %v521 = vpop.f32.mrf.mxu0
        %522 = vdwg.mxu0
        %523 = vmatprep.subr.mxu0 0.0
        %524 = vmatpush1.msra.mxu0 0.0
        %525 = vmatprep.subr.mxu0 0.0
        %526 = vmatpush1.msra.mxu0 0.0
        %527 = vmatprep.subr.mxu0 0.0
        %528 = vmatpush1.msra.mxu0 0.0
        %529 = vmatprep.subr.mxu0 0.0
        %530 = vmatpush1.msra.mxu0 0.0
        %531 = vmatprep.subr.mxu0 0.0
        %532 = vmatpush1.msra.mxu0 0.0
        %533 = vmatprep.subr.mxu0 0.0
        %534 = vmatpush1.msra.mxu0 0.0
        %535 = vmatprep.subr.mxu0 0.0
        %536 = vmatpush1.msra.mxu0 0.0
        %537 = vmatprep.subr.mxu0 0.0
        %538 = vmatpush1.msra.mxu0 0.0
        %539 = vmatprep.subr.mxu0 0.0
        %540 = vmatpush1.msra.mxu0 0.0
        %541 = vmatprep.subr.mxu0 0.0
        %542 = vmatpush1.msra.mxu0 0.0
        %543 = vmatprep.subr.mxu0 0.0
        %544 = vmatpush1.msra.mxu0 0.0
        %545 = vmatprep.subr.mxu0 0.0
        %546 = vmatpush1.msra.mxu0 0.0
        %547 = vmatprep.subr.mxu0 0.0
        %548 = vmatpush1.msra.mxu0 %v335
        %549 = vmatprep.subr.mxu0 0.0
        %550 = vmatpush1.msra.mxu0 %v333
        %551 = vmatprep.subr.mxu0 0.0
        %552 = vmatpush1.msra.mxu0 %v331
        %553 = vmatprep.subr.mxu0 0.0
        %554 = vmatpush1.msra.mxu0 %v329
        %555 = vmatprep.subr.mxu0 0.0
        %556 = vmatpush2.msra.mxu0 0.0
        %557 = vmatprep.subr.mxu0 0.0
        %558 = vmatpush2.msra.mxu0 0.0
        %559 = vmatprep.subr.mxu0 0.0
        %560 = vmatpush2.msra.mxu0 0.0
        %561 = vmatprep.subr.mxu0 0.0
        %562 = vmatpush2.msra.mxu0 0.0
        %563 = vmatprep.subr.mxu0 0.0
        %564 = vmatpush2.msra.mxu0 0.0
        %565 = vmatprep.subr.mxu0 0.0
        %566 = vmatpush2.msra.mxu0 0.0
        %567 = vmatprep.subr.mxu0 0.0
        %568 = vmatpush2.msra.mxu0 0.0
        %569 = vmatprep.subr.mxu0 0.0
        %570 = vmatpush2.msra.mxu0 0.0
        %571 = vmatprep.subr.mxu0 0.0
        %572 = vmatpush2.msra.mxu0 0.0
        %573 = vmatprep.subr.mxu0 0.0
        %574 = vmatpush2.msra.mxu0 0.0
        %575 = vmatprep.subr.mxu0 0.0
        %576 = vmatpush2.msra.mxu0 0.0
        %577 = vmatprep.subr.mxu0 0.0
        %578 = vmatpush2.msra.mxu0 0.0
        %579 = vmatprep.subr.mxu0 0.0
        %580 = vmatpush2.msra.mxu0 0.0
        %581 = vmatprep.subr.mxu0 0.0
        %582 = vmatpush2.msra.mxu0 0.0
        %583 = vmatprep.subr.mxu0 0.0
        %584 = vmatpush2.msra.mxu0 0.0
        %585 = vmatprep.subr.mxu0 0.0
        %586 = vmatpush2.msra.mxu0 0.0
        %587 = vmatprep.mubr.f32.mxu0 0.0
        %588 = vmatmul.mubr.f32.gmra.mxu0 %v340
        %v589 = vpop.f32.mrf.mxu0
        %v590 = vadd.f32 %v337, %v589
        %v591 = vpop.f32.mrf.mxu0
        %592 = vdwg.mxu0
        %v593 = vmax.f32 %v590, 0.0
        %v595 = vsel %vm434, %v593, 0
        %597 = vmatprep.subr.mxu0 0.0
        %598 = vmatpush1.msra.mxu0 0.0
        %599 = vmatprep.subr.mxu0 0.0
        %600 = vmatpush1.msra.mxu0 0.0
        %601 = vmatprep.subr.mxu0 0.0
        %602 = vmatpush1.msra.mxu0 0.0
        %603 = vmatprep.subr.mxu0 0.0
        %604 = vmatpush1.msra.mxu0 0.0
        %605 = vmatprep.subr.mxu0 0.0
        %606 = vmatpush1.msra.mxu0 0.0
        %607 = vmatprep.subr.mxu0 0.0
        %608 = vmatpush1.msra.mxu0 0.0
        %609 = vmatprep.subr.mxu0 0.0
        %610 = vmatpush1.msra.mxu0 0.0
        %611 = vmatprep.subr.mxu0 0.0
        %612 = vmatpush1.msra.mxu0 0.0
        %613 = vmatprep.subr.mxu0 0.0
        %614 = vmatpush1.msra.mxu0 0.0
        %615 = vmatprep.subr.mxu0 0.0
        %616 = vmatpush1.msra.mxu0 0.0
        %617 = vmatprep.subr.mxu0 0.0
        %618 = vmatpush1.msra.mxu0 0.0
        %619 = vmatprep.subr.mxu0 0.0
        %620 = vmatpush1.msra.mxu0 0.0
        %621 = vmatprep.subr.mxu0 0.0
        %622 = vmatpush1.msra.mxu0 0.0
        %623 = vmatprep.subr.mxu0 0.0
        %624 = vmatpush1.msra.mxu0 0.0
        %625 = vmatprep.subr.mxu0 0.0
        %626 = vmatpush1.msra.mxu0 0.0
        %627 = vmatprep.subr.mxu0 0.0
        %628 = vmatpush1.msra.mxu0 %v595
        %629 = vmatprep.subr.mxu0 0.0
        %630 = vmatpush2.msra.mxu0 0.0
        %631 = vmatprep.subr.mxu0 0.0
        %632 = vmatpush2.msra.mxu0 0.0
        %633 = vmatprep.subr.mxu0 0.0
        %634 = vmatpush2.msra.mxu0 0.0
        %635 = vmatprep.subr.mxu0 0.0
        %636 = vmatpush2.msra.mxu0 0.0
        %637 = vmatprep.subr.mxu0 0.0
        %638 = vmatpush2.msra.mxu0 0.0
        %639 = vmatprep.subr.mxu0 0.0
        %640 = vmatpush2.msra.mxu0 0.0
        %641 = vmatprep.subr.mxu0 0.0
        %642 = vmatpush2.msra.mxu0 0.0
        %643 = vmatprep.subr.mxu0 0.0
        %644 = vmatpush2.msra.mxu0 0.0
        %645 = vmatprep.subr.mxu0 0.0
        %646 = vmatpush2.msra.mxu0 0.0
        %647 = vmatprep.subr.mxu0 0.0
        %648 = vmatpush2.msra.mxu0 0.0
        %649 = vmatprep.subr.mxu0 0.0
        %650 = vmatpush2.msra.mxu0 0.0
        %651 = vmatprep.subr.mxu0 0.0
        %652 = vmatpush2.msra.mxu0 0.0
        %653 = vmatprep.subr.mxu0 0.0
        %654 = vmatpush2.msra.mxu0 0.0
        %655 = vmatprep.subr.mxu0 0.0
        %656 = vmatpush2.msra.mxu0 0.0
        %657 = vmatprep.subr.mxu0 0.0
        %658 = vmatpush2.msra.mxu0 0.0
        %659 = vmatprep.subr.mxu0 0.0
        %660 = vmatpush2.msra.mxu0 0.0
        %661 = vmatprep.mubr.f32.mxu0 0.0
        %662 = vmatmul.mubr.f32.gmra.mxu0 %v423
        %v663 = vpop.f32.mrf.mxu0
        %v664 = vadd.f32 %v417, %v663
        %v665 = vpop.f32.mrf.mxu0
        %666 = vmatprep.mubr.f32.mxu0 0.0
        %667 = vmatmul.mubr.f32.gmra.mxu0 %v426
        %v668 = vpop.f32.mrf.mxu0
        %v669 = vadd.f32 %v418, %v668
        %v670 = vpop.f32.mrf.mxu0
        %671 = vmatprep.mubr.f32.mxu0 0.0
        %672 = vmatmul.mubr.f32.gmra.mxu0 %v429
        %v673 = vpop.f32.mrf.mxu0
        %v674 = vadd.f32 %v419, %v673
        %v675 = vpop.f32.mrf.mxu0
        %676 = vmatprep.mubr.f32.mxu0 0.0
        %677 = vmatmul.mubr.f32.gmra.mxu0 %v432
        %v678 = vpop.f32.mrf.mxu0
        %v679 = vadd.f32 %v420, %v678
        %v680 = vpop.f32.mrf.mxu0
        %681 = vdwg.mxu0
        %v682 = vadd.f32 %v505, %v664
        %v683 = vadd.f32 %v510, %v669
        %v684 = vadd.f32 %v515, %v674
        %v685 = vadd.f32 %v520, %v679
        %v686 = vxor.u32 %v682, 2147483648
        %v687 = vxor.u32 %v683, 2147483648
        %v688 = vxor.u32 %v684, 2147483648
        %v689 = vxor.u32 %v685, 2147483648
        %v690 = vmul.f32 %v686, 1.442695
        %v691 = vpow.pop %v690
        %v692 = vmul.f32 %v687, 1.442695
        %v693 = vpow.pop %v692
        %v694 = vmul.f32 %v688, 1.442695
        %v695 = vpow.pop %v694
        %v696 = vmul.f32 %v689, 1.442695
        %v697 = vpow.pop %v696
        %v698 = vadd.f32 %v691, 1.0
        %v699 = vadd.f32 %v693, 1.0
        %v700 = vadd.f32 %v695, 1.0
        %v701 = vadd.f32 %v697, 1.0
        %v702 = vrcp.pop %v698
        %v703 = vmul.f32 1.0, %v702
        %v704 = vrcp.pop %v699
        %v705 = vmul.f32 1.0, %v704
        %v706 = vrcp.pop %v700
        %v707 = vmul.f32 1.0, %v706
        %v708 = vrcp.pop %v701
        %v709 = vmul.f32 1.0, %v708
        %vm710 = vcmask 7168
        %711 = vst.msk [vmem:[%s252] sm:$0xff] %vm710, %v703
        %712 = vst.msk [vmem:[%s252 + $0x8] sm:$0xff] %vm710, %v705
        %713 = vst.msk [vmem:[%s252 + $0x10] sm:$0xff] %vm710, %v707
        %714 = vst.msk [vmem:[%s252 + $0x18] sm:$0xff] %vm710, %v709
      $region48: #{cbam_forward.3} parent=39 // pred_fallthru
        _
      %p715 = scmp.lt.s32.totalorder %s20, 1
      %s716 = scalar_select %p715, %s20, 1
      %s717 = smul.addr %s716, 4
      %s718 = smul.addr %s717, 8
      %s719 = scalar_lea.vmem %s5, %s718
      // Predicated region
      $region49: #{cbam_forward.3} parent=39 // pred_check
        %p720 = pneg %p158
      $region50: #{cbam_forward.3} parent=39 // pred_check_branch
        %722 = sbr.rel (%p720) target = $region52
      $region51: #{cbam_forward.3} parent=39 // pred_region
        _
      $region52: #{cbam_forward.3} parent=39 // pred_fallthru
        _
    $region40: #{cbam_forward.3} parent=5 // pred_fallthru
      _
    %p723 = scmp.le.s32.totalorder 2, %s11
    // Predicated region
    $region53: #{cbam_forward.3} parent=5 // pred_check
      %p724 = pneg %p723
    $region54: #{cbam_forward.3} parent=5 // pred_check_branch
      %726 = sbr.rel (%p724) target = $region56
    $region55: #{cbam_forward.3} parent=5 // pred_region
      %s727 = ssub.s32 %s11, 2
      // Predicated region
      $region57: #{cbam_forward.3} parent=55 // pred_check
        %p728 = pneg %p164
      $region58: #{cbam_forward.3} parent=55 // pred_check_branch
        %730 = sbr.rel (%p728) target = $region60
      $region59: #{cbam_forward.3} parent=55 // pred_region
        %p731 = scmp.lt.s32.totalorder %s22, 1
        %s732 = scalar_select %p731, %s22, 1
        %s733 = smul.addr %s732, 4
        %s734 = smul.addr %s733, 8
        %s735 = scalar_lea.vmem %s5, %s734
      $region60: #{cbam_forward.3} parent=55 // pred_fallthru
        _
    $region56: #{cbam_forward.3} parent=5 // pred_fallthru
      _
  $region6: #{cbam_forward.3} parent=0 // loop_footer
    %s15 = sadd.s32 1, %s11
  $region7: #{cbam_forward.3} parent=0 // loop_footer_branch
    %10 = sbr.rel target = $region3
  $region8: #{cbam_forward.3} parent=0 // loop_exit
    _

// kernel: cbam_forward.5
$region0: #{cbam_forward.5}
  #allocation0 [shape = 'u32[]', space=smem, size = 0x4, offset = 0x4, fixed_abs, tag = 'smem constant byte address 0x4 - core index']
  #allocation1 [shape = 'u32[144,128]{1,0:T(1,128)}', space=vmem, size = 0x12000, scoped, tag = 'internal scratch']
  %s0 = inlined_call_operand.vmem [shape: f32[2,32,256], index: 0, kind: input, shape index: {}]
  %s1 = inlined_call_operand.vmem [shape: f32[2,32,1], index: 1, kind: input, shape index: {}]
  %s2 = inlined_call_operand.vmem [shape: f32[2,1,256], index: 2, kind: input, shape index: {}]
  %s3 = inlined_call_operand.vmem [shape: f32[2,32,256], index: 3, kind: output, shape index: {}]
  %s4 = sld [smem:[#allocation0]]
  $region45: #{cbam_forward.5} parent=0
    _
  %s6 = ssub.s32 1, %s4
  %s7 = scalar_select 0, %s6, %s4
  loop: start=0, step=1, limit=4
  $region2: #{cbam_forward.5} parent=0 // loop_pre_header
    _
  $region3: #{cbam_forward.5} parent=0 // loop_header
    %s9 = sphi 0, %s13
    %p10 = scmp.ge.s32.totalorder %s9, 4
    %s16 = sphi 0, %s35
    %s17 = sphi 0, %s31
    %s18 = sphi 0, %s27
    %s19 = sphi 0, %s16
    %s20 = sphi 0, %s17
    %s21 = sphi 0, %s18
    %s22 = sphi 0, %s19
    %s23 = sphi 0, %s20
    %s24 = sphi 0, %s21
    %s42 = sphi 0, %s44
    %s45 = sphi 0, %s42
    %s46 = sphi 0, %s45
    %s62 = sphi 0, %s46
    %s70 = sphi 0, %s72
    %s73 = sphi 0, %s70
    %s74 = sphi 0, %s73
    %s90 = sphi 0, %s74
    %s98 = sphi 0, %s100
    %s101 = sphi 0, %s98
    %s102 = sphi 0, %s101
    %s118 = sphi 0, %s102
    %s128 = sphi 0, %s130
    %s131 = sphi 0, %s128
    %s132 = sphi 0, %s131
    %s148 = sphi 0, %s132
  $region4: #{cbam_forward.5} parent=0 // loop_header_branch
    %12 = sbr.rel (%p10) target = $region8
  $region5: #{cbam_forward.5} parent=0 // loop_body
    %s14 = ssub.s32 %s9, 1
    %s15 = ssub.s32 %s9, 2
    %s25 = sadd.s32 1, %s18
    %p26 = scmp.ge.s32.totalorder %s25, 1
    %s27 = scalar_select %p26, 0, %s25
    %s28 = sadd.s32 1, %s17
    %s29 = scalar_select %p26, %s28, %s17
    %p30 = scmp.ge.s32.totalorder %s29, 1
    %s31 = scalar_select %p30, 0, %s29
    %s32 = sadd.s32 1, %s16
    %s33 = scalar_select %p30, %s32, %s16
    %p34 = scmp.ge.s32.totalorder %s33, 2
    %s35 = scalar_select %p34, 0, %s33
    %s36 = ssub.s32 %s16, %s35
    %s37 = ssub.s32 %s17, %s31
    %s38 = sor.u32 %s36, %s37
    %s39 = ssub.s32 %s18, %s27
    %s40 = sor.u32 %s38, %s39
    %p41 = scmp.eq.s32.totalorder %s40, 0
    %s43 = sadd.s32 %s42, 1
    %s44 = scalar_select %p41, %s42, %s43
    %p47 = pneg %p41
    %p48 = scmp.eq.s32.totalorder %s9, 1
    %p49 = por %p47, %p48
    %p50 = scmp.ne.s32.totalorder %s42, %s45
    %p51 = scmp.eq.s32.totalorder %s9, 0
    %p52 = por %p50, %p51
    %p53 = scmp.ne.s32.totalorder %s42, %s45
    %p54 = scmp.eq.s32.totalorder %s14, 1
    %p55 = por %p53, %p54
    %p56 = scmp.ne.s32.totalorder %s45, %s46
    %p57 = scmp.eq.s32.totalorder %s14, 0
    %p58 = por %p56, %p57
    %p59 = scmp.ne.s32.totalorder %s45, %s46
    %p60 = scmp.eq.s32.totalorder %s15, 1
    %p61 = por %p59, %p60
    %p63 = scmp.ne.s32.totalorder %s46, %s62
    %p64 = scmp.eq.s32.totalorder %s15, 0
    %p65 = por %p63, %p64
    %s66 = ssub.s32 %s16, %s35
    %s67 = ssub.s32 %s17, %s31
    %s68 = sor.u32 %s66, %s67
    %p69 = scmp.eq.s32.totalorder %s68, 0
    %s71 = sadd.s32 %s70, 1
    %s72 = scalar_select %p69, %s70, %s71
    %p75 = pneg %p69
    %p76 = scmp.eq.s32.totalorder %s9, 1
    %p77 = por %p75, %p76
    %p78 = scmp.ne.s32.totalorder %s70, %s73
    %p79 = scmp.eq.s32.totalorder %s9, 0
    %p80 = por %p78, %p79
    %p81 = scmp.ne.s32.totalorder %s70, %s73
    %p82 = scmp.eq.s32.totalorder %s14, 1
    %p83 = por %p81, %p82
    %p84 = scmp.ne.s32.totalorder %s73, %s74
    %p85 = scmp.eq.s32.totalorder %s14, 0
    %p86 = por %p84, %p85
    %p87 = scmp.ne.s32.totalorder %s73, %s74
    %p88 = scmp.eq.s32.totalorder %s15, 1
    %p89 = por %p87, %p88
    %p91 = scmp.ne.s32.totalorder %s74, %s90
    %p92 = scmp.eq.s32.totalorder %s15, 0
    %p93 = por %p91, %p92
    %s94 = ssub.s32 %s16, %s35
    %s95 = ssub.s32 %s18, %s27
    %s96 = sor.u32 %s94, %s95
    %p97 = scmp.eq.s32.totalorder %s96, 0
    %s99 = sadd.s32 %s98, 1
    %s100 = scalar_select %p97, %s98, %s99
    %p103 = pneg %p97
    %p104 = scmp.eq.s32.totalorder %s9, 1
    %p105 = por %p103, %p104
    %p106 = scmp.ne.s32.totalorder %s98, %s101
    %p107 = scmp.eq.s32.totalorder %s9, 0
    %p108 = por %p106, %p107
    %p109 = scmp.ne.s32.totalorder %s98, %s101
    %p110 = scmp.eq.s32.totalorder %s14, 1
    %p111 = por %p109, %p110
    %p112 = scmp.ne.s32.totalorder %s101, %s102
    %p113 = scmp.eq.s32.totalorder %s14, 0
    %p114 = por %p112, %p113
    %p115 = scmp.ne.s32.totalorder %s101, %s102
    %p116 = scmp.eq.s32.totalorder %s15, 1
    %p117 = por %p115, %p116
    %p119 = scmp.ne.s32.totalorder %s102, %s118
    %p120 = scmp.eq.s32.totalorder %s15, 0
    %p121 = por %p119, %p120
    %s122 = ssub.s32 %s16, %s35
    %s123 = ssub.s32 %s17, %s31
    %s124 = sor.u32 %s122, %s123
    %s125 = ssub.s32 %s18, %s27
    %s126 = sor.u32 %s124, %s125
    %p127 = scmp.eq.s32.totalorder %s126, 0
    %s129 = sadd.s32 %s128, 1
    %s130 = scalar_select %p127, %s128, %s129
    %p133 = pneg %p127
    %p134 = scmp.eq.s32.totalorder %s9, 1
    %p135 = por %p133, %p134
    %p136 = scmp.ne.s32.totalorder %s128, %s131
    %p137 = scmp.eq.s32.totalorder %s9, 0
    %p138 = por %p136, %p137
    %p139 = scmp.ne.s32.totalorder %s128, %s131
    %p140 = scmp.eq.s32.totalorder %s14, 1
    %p141 = por %p139, %p140
    %p142 = scmp.ne.s32.totalorder %s131, %s132
    %p143 = scmp.eq.s32.totalorder %s14, 0
    %p144 = por %p142, %p143
    %p145 = scmp.ne.s32.totalorder %s131, %s132
    %p146 = scmp.eq.s32.totalorder %s15, 1
    %p147 = por %p145, %p146
    %p149 = scmp.ne.s32.totalorder %s132, %s148
    %p150 = scmp.eq.s32.totalorder %s15, 0
    %p151 = por %p149, %p150
    %p152 = scmp.le.s32.totalorder 1, %s9
    %p153 = scmp.lt.s32.totalorder %s9, 3
    %p154 = pnand %p152, %p153
    %p155 = pneg %p154
    // Predicated region
    $region9: #{cbam_forward.5} parent=5 // pred_check
      _
    $region10: #{cbam_forward.5} parent=5 // pred_check_branch
      %157 = sbr.rel (%p154) target = $region12
    $region11: #{cbam_forward.5} parent=5 // pred_region
      %s158 = ssub.s32 %s9, 1
    $region12: #{cbam_forward.5} parent=5 // pred_fallthru
      _
    %p159 = scmp.lt.s32.totalorder %s9, 2
    // Predicated region
    $region13: #{cbam_forward.5} parent=5 // pred_check
      %p160 = pneg %p159
    $region14: #{cbam_forward.5} parent=5 // pred_check_branch
      %162 = sbr.rel (%p160) target = $region16
    $region15: #{cbam_forward.5} parent=5 // pred_region
      // Predicated region
      $region17: #{cbam_forward.5} parent=15 // pred_check
        %p163 = pneg %p52
      $region18: #{cbam_forward.5} parent=15 // pred_check_branch
        %165 = sbr.rel (%p163) target = $region20
      $region19: #{cbam_forward.5} parent=15 // pred_region
        %s166 = smul.u32 4, %s17
        %s167 = smul.u32 2, %s18
        %p168 = scmp.lt.s32.totalorder %s16, 1
        %s169 = scalar_select %p168, %s16, 1
        %p170 = scmp.lt.s32.totalorder %s166, 3
        %s171 = scalar_select %p170, %s166, 3
        %p172 = scmp.lt.s32.totalorder %s167, 1
        %s173 = scalar_select %p172, %s167, 1
        %s174 = smul.addr %s171, 2
        %s175 = sadd.s32 %s173, %s174
        %s176 = smul.addr %s169, 8
        %s177 = sadd.s32 %s175, %s176
        %s178 = smul.addr %s177, 8
        %s179 = scalar_lea.vmem %s0, %s178
        %s180 = smul.u32 4, %s17
        %s181 = smul.u32 2, %s18
      $region20: #{cbam_forward.5} parent=15 // pred_fallthru
        _
      // Predicated region
      $region21: #{cbam_forward.5} parent=15 // pred_check
        %p182 = pneg %p80
      $region22: #{cbam_forward.5} parent=15 // pred_check_branch
        %184 = sbr.rel (%p182) target = $region24
      $region23: #{cbam_forward.5} parent=15 // pred_region
        %s185 = smul.u32 4, %s17
        %p186 = scmp.lt.s32.totalorder %s16, 1
        %s187 = scalar_select %p186, %s16, 1
        %p188 = scmp.lt.s32.totalorder %s185, 3
        %s189 = scalar_select %p188, %s185, 3
        %s190 = smul.addr %s187, 4
        %s191 = sadd.s32 %s189, %s190
        %s192 = smul.addr %s191, 8
        %s193 = scalar_lea.vmem %s1, %s192
        %s194 = smul.u32 4, %s17
      $region24: #{cbam_forward.5} parent=15 // pred_fallthru
        _
      // Predicated region
      $region25: #{cbam_forward.5} parent=15 // pred_check
        %p195 = pneg %p108
      $region26: #{cbam_forward.5} parent=15 // pred_check_branch
        %197 = sbr.rel (%p195) target = $region28
      $region27: #{cbam_forward.5} parent=15 // pred_region
        %s198 = smul.u32 2, %s18
        %p199 = scmp.lt.s32.totalorder %s16, 1
        %s200 = scalar_select %p199, %s16, 1
        %p201 = scmp.lt.s32.totalorder %s198, 1
        %s202 = scalar_select %p201, %s198, 1
        %s203 = smul.addr %s200, 2
        %s204 = sadd.s32 %s202, %s203
        %s205 = scalar_lea.vmem %s2, %s204
        %s206 = smul.u32 2, %s18
      $region28: #{cbam_forward.5} parent=15 // pred_fallthru
        _
    $region16: #{cbam_forward.5} parent=5 // pred_fallthru
      _
    %p207 = scmp.le.s32.totalorder 1, %s9
    %p208 = scmp.lt.s32.totalorder %s9, 3
    %p209 = pnand %p207, %p208
    %p210 = pneg %p209
    // Predicated region
    $region29: #{cbam_forward.5} parent=5 // pred_check
      _
    $region30: #{cbam_forward.5} parent=5 // pred_check_branch
      %212 = sbr.rel (%p209) target = $region32
    $region31: #{cbam_forward.5} parent=5 // pred_region
      %s213 = ssub.s32 %s9, 1
      %s214 = smul.u32 4, %s20
      %s215 = smul.u32 2, %s21
      %p216 = scmp.lt.s32.totalorder %s19, 1
      %s217 = scalar_select %p216, %s19, 1
      %p218 = scmp.lt.s32.totalorder %s214, 3
      %s219 = scalar_select %p218, %s214, 3
      %p220 = scmp.lt.s32.totalorder %s215, 1
      %s221 = scalar_select %p220, %s215, 1
      %s222 = smul.addr %s219, 2
      %s223 = sadd.s32 %s221, %s222
      %s224 = smul.addr %s217, 8
      %s225 = sadd.s32 %s223, %s224
      %s226 = smul.addr %s225, 8
      %s227 = scalar_lea.vmem %s0, %s226
      %p228 = pneg %p58
      %p229 = pneg %p55
      %s230 = smul.u32 4, %s20
      %p231 = scmp.lt.s32.totalorder %s19, 1
      %s232 = scalar_select %p231, %s19, 1
      %p233 = scmp.lt.s32.totalorder %s230, 3
      %s234 = scalar_select %p233, %s230, 3
      %s235 = smul.addr %s232, 4
      %s236 = sadd.s32 %s234, %s235
      %s237 = smul.addr %s236, 8
      %s238 = scalar_lea.vmem %s1, %s237
      %p239 = pneg %p86
      %p240 = pneg %p83
      %s241 = smul.u32 2, %s21
      %p242 = scmp.lt.s32.totalorder %s19, 1
      %s243 = scalar_select %p242, %s19, 1
      %p244 = scmp.lt.s32.totalorder %s241, 1
      %s245 = scalar_select %p244, %s241, 1
      %s246 = smul.addr %s243, 2
      %s247 = sadd.s32 %s245, %s246
      %s248 = scalar_lea.vmem %s2, %s247
      %p249 = pneg %p114
      %p250 = pneg %p111
      %p251 = pneg %p144
      %p252 = pneg %p141
      %s253 = smul.u32 4, %s20
      %s254 = smul.u32 2, %s21
      %p255 = scmp.lt.s32.totalorder %s19, 1
      %s256 = scalar_select %p255, %s19, 1
      %p257 = scmp.lt.s32.totalorder %s253, 3
      %s258 = scalar_select %p257, %s253, 3
      %p259 = scmp.lt.s32.totalorder %s254, 1
      %s260 = scalar_select %p259, %s254, 1
      %s261 = smul.addr %s258, 2
      %s262 = sadd.s32 %s260, %s261
      %s263 = smul.addr %s256, 8
      %s264 = sadd.s32 %s262, %s263
      %s265 = smul.addr %s264, 8
      %s266 = scalar_lea.vmem %s3, %s265
      %s267 = smul.u32 4, %s20
      %s268 = smul.u32 2, %s21
      %p269 = scmp.lt.s32.totalorder %s19, 1
      %s270 = scalar_select %p269, %s19, 1
      %p271 = scmp.lt.s32.totalorder %s267, 3
      %s272 = scalar_select %p271, %s267, 3
      %p273 = scmp.lt.s32.totalorder %s268, 1
      %s274 = scalar_select %p273, %s268, 1
      %s275 = smul.addr %s272, 2
      %s276 = sadd.s32 %s274, %s275
      %s277 = smul.addr %s270, 8
      %s278 = sadd.s32 %s276, %s277
      %s279 = smul.addr %s278, 8
      %s280 = scalar_lea.vmem %s0, %s279
      %s281 = smul.u32 4, %s20
      %s282 = smul.u32 2, %s21
      %s283 = smul.u32 4, %s20
      %p284 = scmp.lt.s32.totalorder %s19, 1
      %s285 = scalar_select %p284, %s19, 1
      %p286 = scmp.lt.s32.totalorder %s283, 3
      %s287 = scalar_select %p286, %s283, 3
      %s288 = smul.addr %s285, 4
      %s289 = sadd.s32 %s287, %s288
      %s290 = smul.addr %s289, 8
      %s291 = scalar_lea.vmem %s1, %s290
      %s292 = smul.u32 4, %s20
      %s293 = smul.u32 2, %s21
      %p294 = scmp.lt.s32.totalorder %s19, 1
      %s295 = scalar_select %p294, %s19, 1
      %p296 = scmp.lt.s32.totalorder %s293, 1
      %s297 = scalar_select %p296, %s293, 1
      %s298 = smul.addr %s295, 2
      %s299 = sadd.s32 %s297, %s298
      %s300 = scalar_lea.vmem %s2, %s299
      %s301 = smul.u32 2, %s21
      %s302 = smul.u32 4, %s20
      %s303 = smul.u32 2, %s21
      %p304 = scmp.lt.s32.totalorder %s19, 1
      %s305 = scalar_select %p304, %s19, 1
      %p306 = scmp.lt.s32.totalorder %s302, 3
      %s307 = scalar_select %p306, %s302, 3
      %p308 = scmp.lt.s32.totalorder %s303, 1
      %s309 = scalar_select %p308, %s303, 1
      %s310 = smul.addr %s307, 2
      %s311 = sadd.s32 %s309, %s310
      %s312 = smul.addr %s305, 8
      %s313 = sadd.s32 %s311, %s312
      %s314 = smul.addr %s313, 8
      %s315 = scalar_lea.vmem %s3, %s314
      %s316 = smul.u32 4, %s20
      %s317 = smul.u32 2, %s21
      %v318 = vld [vmem:[%s300] sm:$0x3]
      %v319 = vxor.u32 %v318, 2147483648
      %v320 = vmul.f32 %v319, 1.442695
      %v321 = vpow.pop %v320
      %v322 = vadd.f32 %v321, 1.0
      %v323 = vrcp.pop %v322
      %v324 = vmul.f32 1.0, %v323
      %v325 = vld [vmem:[%s280] sm:$0xff]
      %v326 = vld [vmem:[%s280 + $0x8] sm:$0xff]
      %v327 = vld [vmem:[%s280 + $0x10] sm:$0xff]
      %v328 = vld [vmem:[%s280 + $0x18] sm:$0xff]
      %v329 = vld [vmem:[%s280 + $0x20] sm:$0xff]
      %v330 = vld [vmem:[%s280 + $0x28] sm:$0xff]
      %v331 = vld [vmem:[%s280 + $0x30] sm:$0xff]
      %v332 = vld [vmem:[%s280 + $0x38] sm:$0xff]
      %v333 = vld [vmem:[%s291] sm:$0xff]
      %v334 = vld [vmem:[%s291 + $0x8] sm:$0xff]
      %v335 = vld [vmem:[%s291 + $0x10] sm:$0xff]
      %v336 = vld [vmem:[%s291 + $0x18] sm:$0xff]
      %338 = vset.pattern.permute.xlu0 0
      %339 = vperm.xlu0 %338, %v333
      %v340 = vpop.permute.xlu0 %339
      %343 = vset.pattern.permute.xlu0 0
      %344 = vperm.xlu0 %343, %v334
      %v345 = vpop.permute.xlu0 %344
      %348 = vset.pattern.permute.xlu0 0
      %349 = vperm.xlu0 %348, %v335
      %v350 = vpop.permute.xlu0 %349
      %353 = vset.pattern.permute.xlu0 0
      %354 = vperm.xlu0 %353, %v336
      %v355 = vpop.permute.xlu0 %354
      %v358 = vlaneseq
      %v359 = vshrl.u32 %v358, 7
      %v360 = vsub.s32 0, %v359
      %v361 = vrot.slane %v324, %v360
      %v362 = vlaneseq
      %v363 = vshrl.u32 %v362, 7
      %v364 = vsub.s32 1, %v363
      %v365 = vrot.slane %v324, %v364
      %v368 = vmul.f32 %v340, %v361
      %v369 = vmul.f32 %v340, %v365
      %v370 = vmul.f32 %v345, %v361
      %v371 = vmul.f32 %v345, %v365
      %v372 = vmul.f32 %v350, %v361
      %v373 = vmul.f32 %v350, %v365
      %v374 = vmul.f32 %v355, %v361
      %v375 = vmul.f32 %v355, %v365
      %v376 = vmul.f32 %v325, %v368
      %v377 = vmul.f32 %v326, %v369
      %v378 = vmul.f32 %v327, %v370
      %v379 = vmul.f32 %v328, %v371
      %v380 = vmul.f32 %v329, %v372
      %v381 = vmul.f32 %v330, %v373
      %v382 = vmul.f32 %v331, %v374
      %v383 = vmul.f32 %v332, %v375
      %384 = vst [vmem:[%s315] sm:$0xff] %v376
      %385 = vst [vmem:[%s315 + $0x8] sm:$0xff] %v377
      %386 = vst [vmem:[%s315 + $0x10] sm:$0xff] %v378
      %387 = vst [vmem:[%s315 + $0x18] sm:$0xff] %v379
      %388 = vst [vmem:[%s315 + $0x20] sm:$0xff] %v380
      %389 = vst [vmem:[%s315 + $0x28] sm:$0xff] %v381
      %390 = vst [vmem:[%s315 + $0x30] sm:$0xff] %v382
      %391 = vst [vmem:[%s315 + $0x38] sm:$0xff] %v383
      %s392 = smul.u32 4, %s20
      %s393 = smul.u32 2, %s21
      %p394 = scmp.lt.s32.totalorder %s19, 1
      %s395 = scalar_select %p394, %s19, 1
      %p396 = scmp.lt.s32.totalorder %s392, 3
      %s397 = scalar_select %p396, %s392, 3
      %p398 = scmp.lt.s32.totalorder %s393, 1
      %s399 = scalar_select %p398, %s393, 1
      %s400 = smul.addr %s397, 2
      %s401 = sadd.s32 %s399, %s400
      %s402 = smul.addr %s395, 8
      %s403 = sadd.s32 %s401, %s402
      %s404 = smul.addr %s403, 8
      %s405 = scalar_lea.vmem %s3, %s404
      // Predicated region
      $region33: #{cbam_forward.5} parent=31 // pred_check
        %p406 = pneg %p141
      $region34: #{cbam_forward.5} parent=31 // pred_check_branch
        %408 = sbr.rel (%p406) target = $region36
      $region35: #{cbam_forward.5} parent=31 // pred_region
        %s409 = smul.u32 4, %s20
        %s410 = smul.u32 2, %s21
      $region36: #{cbam_forward.5} parent=31 // pred_fallthru
        _
    $region32: #{cbam_forward.5} parent=5 // pred_fallthru
      _
    %p411 = scmp.le.s32.totalorder 2, %s9
    // Predicated region
    $region37: #{cbam_forward.5} parent=5 // pred_check
      %p412 = pneg %p411
    $region38: #{cbam_forward.5} parent=5 // pred_check_branch
      %414 = sbr.rel (%p412) target = $region40
    $region39: #{cbam_forward.5} parent=5 // pred_region
      %s415 = ssub.s32 %s9, 2
      // Predicated region
      $region41: #{cbam_forward.5} parent=39 // pred_check
        %p416 = pneg %p147
      $region42: #{cbam_forward.5} parent=39 // pred_check_branch
        %418 = sbr.rel (%p416) target = $region44
      $region43: #{cbam_forward.5} parent=39 // pred_region
        %s419 = smul.u32 4, %s23
        %s420 = smul.u32 2, %s24
        %p421 = scmp.lt.s32.totalorder %s22, 1
        %s422 = scalar_select %p421, %s22, 1
        %p423 = scmp.lt.s32.totalorder %s419, 3
        %s424 = scalar_select %p423, %s419, 3
        %p425 = scmp.lt.s32.totalorder %s420, 1
        %s426 = scalar_select %p425, %s420, 1
        %s427 = smul.addr %s424, 2
        %s428 = sadd.s32 %s426, %s427
        %s429 = smul.addr %s422, 8
        %s430 = sadd.s32 %s428, %s429
        %s431 = smul.addr %s430, 8
        %s432 = scalar_lea.vmem %s3, %s431
      $region44: #{cbam_forward.5} parent=39 // pred_fallthru
        _
    $region40: #{cbam_forward.5} parent=5 // pred_fallthru
      _
  $region6: #{cbam_forward.5} parent=0 // loop_footer
    %s13 = sadd.s32 1, %s9
  $region7: #{cbam_forward.5} parent=0 // loop_footer_branch
    %8 = sbr.rel target = $region3
  $region8: #{cbam_forward.5} parent=0 // loop_exit
    _

</llo_original>
